<compile_context>
chip_gen: v6e
topology: v6e:2x2x1
jax: 0.10.0
libtpu: 0.0.40
codegen_flags: <defaults>
</compile_context>

<pallas_src>
import functools

import jax
import jax.numpy as jnp
from jax.experimental import pallas as pl
from jax.experimental.pallas import tpu as pltpu


NEG_SLOPE = 0.01   # torch.nn.LeakyReLU default negative_slope
LANE = 128         # TPU lane width (last dim alignment)
SUBLANE = 8        # TPU sublane width (second-to-last dim alignment)


def _round_up(n, m):
    return ((n + m - 1) // m) * m


# ---------------------------------------------------------------------------
# Kernel body: one batch tile through the 5 fused Linear(+LeakyReLU) layers.
# Matmul operands are bf16 at the MXU boundary (f32 accumulation via
# preferred_element_type); bias add + activation stay f32; the hidden state is
# re-cast to bf16 between layers to halve live vreg bytes.
# ---------------------------------------------------------------------------
def mlp_kernel(x_ref,
               w1_ref, b1_ref,
               w2_ref, b2_ref,
               w3_ref, b3_ref,
               w4_ref, b4_ref,
               w5_ref, b5_ref,
               o_ref):
    h = x_ref[...]  # (TILE_B, F_pad) bf16 — cast once in the wrapper

    for w_ref, b_ref in ((w1_ref, b1_ref), (w2_ref, b2_ref),
                         (w3_ref, b3_ref), (w4_ref, b4_ref)):
        acc = jnp.dot(h, w_ref[...], preferred_element_type=jnp.float32)
        acc = acc + b_ref[...]                       # (1, H_pad) f32 broadcast
        # LeakyReLU with 0 < slope < 1: max(x, slope*x) == where(x>=0, x, s*x)
        h = jnp.maximum(acc, NEG_SLOPE * acc).astype(w_ref.dtype)

    out = jnp.dot(h, w5_ref[...], preferred_element_type=jnp.float32)
    out = out + b5_ref[...]
    o_ref[...] = out.astype(o_ref.dtype)


# ---------------------------------------------------------------------------
# One-time parameter preparation (hoisted out of the per-call hot path).
# ---------------------------------------------------------------------------
def prepare_params(params, mxu_dtype=jnp.bfloat16):
    """Pad every (W:(in,out), b:(1,out)) to lane multiples and cast W to the
    MXU dtype.  Zero padding keeps the real output columns numerically exact.
    Returns (padded_params, n_targets)."""
    padded = []
    for w, b in params:
        d_in, d_out = w.shape
        d_in_pad = _round_up(d_in, LANE)
        d_out_pad = _round_up(d_out, LANE)
        w_p = jnp.pad(w, ((0, d_in_pad - d_in), (0, d_out_pad - d_out))
                      ).astype(mxu_dtype)
        b_p = jnp.pad(b.reshape(1, -1), ((0, 0), (0, d_out_pad - d_out))
                      ).astype(jnp.float32)
        padded.append((w_p, b_p))
    n_targets = params[-1][0].shape[1]
    return tuple(padded), n_targets


def _estimate_vmem_bytes(tile_b, f_pad, t_pad, padded_params,
                         weight_buffers, x_buffers, out_buffers, out_itemsize):
    """Explicit VMEM budget: resident weights/biases + buffered x/out tiles
    + transient hidden (f32 accumulator + bf16 recast of the widest layer)."""
    w_bytes = sum(w.size * w.dtype.itemsize + b.size * b.dtype.itemsize
                  for w, b in padded_params) * weight_buffers
    x_bytes = x_buffers * tile_b * f_pad * padded_params[0][0].dtype.itemsize
    o_bytes = out_buffers * tile_b * t_pad * out_itemsize
    h_pad = max(w.shape[1] for w, _ in padded_params)
    h_bytes = tile_b * h_pad * (4 + 2)
    return w_bytes + x_bytes + o_bytes + h_bytes


def _spec(shape, index_map, buffers):
    if buffers == 2:        # Pallas default double-buffering
        return pl.BlockSpec(shape, index_map)
    return pl.BlockSpec(shape, index_map, pipeline_mode=pl.Buffered(buffers))


# ---------------------------------------------------------------------------
# Forward pass (jitted; all tiling logic depends only on static shapes).
# ---------------------------------------------------------------------------
@functools.partial(
    jax.jit,
    static_argnames=("n_targets", "tile_b", "out_dtype",
                     "weight_buffers", "x_buffers"))
def basic_mlp_forward(x, padded_params, *, n_targets, tile_b=512,
                      out_dtype=jnp.float32, weight_buffers=1, x_buffers=2):
    """x: (batch, n_features) f32; padded_params from prepare_params().

    Computes h @ W + b per layer (== PyTorch x @ W.T + b with W:(out,in)).
    """
    batch, n_features = x.shape
    f_pad = _round_up(n_features, LANE)
    t_pad = padded_params[-1][0].shape[1]
    mxu_dtype = padded_params[0][0].dtype
    out_itemsize = jnp.dtype(out_dtype).itemsize

    # ---- generation-aware VMEM budget (leave headroom for compiler scratch)
    try:
        vmem_phys = pltpu.get_tpu_info().vmem_capacity_bytes
    except Exception:
        vmem_phys = 128 * 1024 * 1024
    budget = int(vmem_phys * 0.85)      # ~54 MiB on v7x, ~108 MiB on v5e/v6e

    # ---- batch tiling -------------------------------------------------------
    b_aligned = _round_up(batch, SUBLANE)
    tile_b = min(_round_up(tile_b, SUBLANE), b_aligned)

    # Feasibility guard: if even the smallest tile can't fit alongside the
    # resident weights, the fully-weight-resident design is wrong for this
    # hidden size / generation.
    if _estimate_vmem_bytes(SUBLANE, f_pad, t_pad, padded_params,
                            weight_buffers, x_buffers, 2, out_itemsize) > budget:
        # TODO(synk): fall back to a K-tiled (extra grid axis / emit_pipeline)
        # design for very large hidden sizes instead of erroring out.
        raise ValueError("BasicMLP weights do not fit VMEM-resident on this "
                         "TPU generation; a K-tiled kernel is required.")

    # Shrink the batch tile until the explicit byte estimate fits the budget.
    while tile_b > SUBLANE and _estimate_vmem_bytes(
            tile_b, f_pad, t_pad, padded_params,
            weight_buffers, x_buffers, 2, out_itemsize) > budget:
        tile_b = max(SUBLANE, _round_up(tile_b // 2, SUBLANE))

    # Prefer grid_b >= 2 so the "parallel" batch axis can shard across both
    # TensorCores on v7x (no-op on v5e/v6e; only ever shrinks tile_b).
    if tile_b >= b_aligned and b_aligned > SUBLANE:
        tile_b = _round_up((b_aligned + 1) // 2, SUBLANE)

    b_pad = _round_up(b_aligned, tile_b)
    grid_b = b_pad // tile_b

    # ---- pad + cast the streamed activation (zero padding is exact) --------
    x_p = jnp.pad(x, ((0, b_pad - batch), (0, f_pad - n_features))
                  ).astype(mxu_dtype)

    # ---- specs: activations stream over the grid, weights stay resident ----
    flat = [x_p]
    in_specs = [_spec((tile_b, f_pad), lambda i: (i, 0), x_buffers)]
    for w_p, b_p in padded_params:
        flat += [w_p, b_p]
        in_specs += [_spec(w_p.shape, lambda i: (0, 0), weight_buffers),
                     _spec(b_p.shape, lambda i: (0, 0), weight_buffers)]

    out = pl.pallas_call(
        mlp_kernel,
        out_shape=jax.ShapeDtypeStruct((b_pad, t_pad), out_dtype),
        grid=(grid_b,),
        in_specs=in_specs,
        out_specs=pl.BlockSpec((tile_b, t_pad), lambda i: (i, 0)),
        compiler_params=pltpu.CompilerParams(
            dimension_semantics=("parallel",),
            vmem_limit_bytes=budget,
        ),
    )(*flat)

    return out[:batch, :n_targets]


# ---------------------------------------------------------------------------
# Init + references
# ---------------------------------------------------------------------------
def init_params(key, n_features, n_hidden, n_targets):
    """Deterministic init mimicking nn.Linear's U(-1/sqrt(in), 1/sqrt(in))."""
    dims = [(n_features, n_hidden),
            (n_hidden, n_hidden),
            (n_hidden, n_hidden),
            (n_hidden, n_hidden),
            (n_hidden, n_targets)]
    params = []
    for (d_in, d_out) in dims:
        key, kw, kb = jax.random.split(key, 3)
        bound = 1.0 / jnp.sqrt(jnp.float32(d_in))
        w = jax.random.uniform(kw, (d_in, d_out), jnp.float32, -bound, bound)
        b = jax.random.uniform(kb, (1, d_out), jnp.float32, -bound, bound)
        params.append((w, b))
    return params


def reference_forward_f32(x, params):
    """Pure f32 reference (matches the original PyTorch module semantics)."""
    h = x
    for i, (w, b) in enumerate(params):
        h = h @ w + b
        if i < len(params) - 1:
            h = jnp.where(h >= 0, h, NEG_SLOPE * h)
    return h


def reference_forward_bf16(x, params):
    """Reference with the same bf16 MXU-boundary casting as the kernel."""
    h = x.astype(jnp.bfloat16)
    for i, (w, b) in enumerate(params):
        acc = jnp.dot(h, w.astype(jnp.bfloat16),
                      preferred_element_type=jnp.float32) + b
        if i < len(params) - 1:
            h = jnp.where(acc >= 0, acc, NEG_SLOPE * acc).astype(jnp.bfloat16)
        else:
            h = acc
    return h


if __name__ == "__main__":
    key = jax.random.PRNGKey(0)
    k_x, k_p = jax.random.split(key)

    batch, n_features, n_hidden, n_targets = 8, 16, 32, 8
    x = jax.random.normal(k_x, (batch, n_features), jnp.float32)
    params = init_params(k_p, n_features, n_hidden, n_targets)

    # One-time parameter pad/cast (out of the per-call hot path).
    padded_params, n_tgt = prepare_params(params)

    try:
        out = basic_mlp_forward(x, padded_params, n_targets=n_tgt)
        out = jax.block_until_ready(out)
    except Exception:
        # Fallback: if this toolchain rejects single-buffered pipeline_mode on
        # constant-index blocks, retry with default double-buffered specs.
        out = basic_mlp_forward(x, padded_params, n_targets=n_tgt,
                                weight_buffers=2, x_buffers=2)
        out = jax.block_until_ready(out)

    assert out.shape == (batch, n_targets)

    # Tight check vs a reference that uses the same bf16 MXU-boundary casts.
    ref_bf16 = reference_forward_bf16(x, params)
    assert jnp.allclose(out, ref_bf16, atol=1e-2, rtol=1e-2), \
        "mismatch vs bf16-boundary reference"

    # Loose check vs the original f32 semantics (bf16 inputs => ~1% error).
    ref_f32 = reference_forward_f32(x, params)
    assert jnp.allclose(out, ref_f32, atol=5e-2, rtol=5e-2), \
        "mismatch vs f32 reference"

    print("KERNEL_OK")
</pallas_src>

<mosaic_0001>
module attributes {stable_mosaic.version = 11 : i64} {
  func.func @mlp_kernel(%arg0: i32, %arg1: memref<8x128xbf16, #tpu.memory_space<vmem>>, %arg2: memref<128x128xbf16, #tpu.memory_space<vmem>>, %arg3: memref<1x128xf32, #tpu.memory_space<vmem>>, %arg4: memref<128x128xbf16, #tpu.memory_space<vmem>>, %arg5: memref<1x128xf32, #tpu.memory_space<vmem>>, %arg6: memref<128x128xbf16, #tpu.memory_space<vmem>>, %arg7: memref<1x128xf32, #tpu.memory_space<vmem>>, %arg8: memref<128x128xbf16, #tpu.memory_space<vmem>>, %arg9: memref<1x128xf32, #tpu.memory_space<vmem>>, %arg10: memref<128x128xbf16, #tpu.memory_space<vmem>>, %arg11: memref<1x128xf32, #tpu.memory_space<vmem>>, %arg12: memref<8x128xf32, #tpu.memory_space<vmem>>) attributes {dimension_semantics = [#tpu.dimension_semantics<parallel>], iteration_bounds = array<i64: 1>, scalar_prefetch = 0 : i64, scratch_operands = 0 : i64, tpu.core_type = #tpu.core_type<tc>, window_params = [{transform_indices = @transform_0, window_bounds = array<i64: 8, 128>}, {pipeline_mode = #tpu.pipeline_mode<synchronous>, transform_indices = @transform_1, window_bounds = array<i64: 128, 128>}, {pipeline_mode = #tpu.pipeline_mode<synchronous>, transform_indices = @transform_2, window_bounds = array<i64: 1, 128>}, {pipeline_mode = #tpu.pipeline_mode<synchronous>, transform_indices = @transform_3, window_bounds = array<i64: 128, 128>}, {pipeline_mode = #tpu.pipeline_mode<synchronous>, transform_indices = @transform_4, window_bounds = array<i64: 1, 128>}, {pipeline_mode = #tpu.pipeline_mode<synchronous>, transform_indices = @transform_5, window_bounds = array<i64: 128, 128>}, {pipeline_mode = #tpu.pipeline_mode<synchronous>, transform_indices = @transform_6, window_bounds = array<i64: 1, 128>}, {pipeline_mode = #tpu.pipeline_mode<synchronous>, transform_indices = @transform_7, window_bounds = array<i64: 128, 128>}, {pipeline_mode = #tpu.pipeline_mode<synchronous>, transform_indices = @transform_8, window_bounds = array<i64: 1, 128>}, {pipeline_mode = #tpu.pipeline_mode<synchronous>, transform_indices = @transform_9, window_bounds = array<i64: 128, 128>}, {pipeline_mode = #tpu.pipeline_mode<synchronous>, transform_indices = @transform_10, window_bounds = array<i64: 1, 128>}, {transform_indices = @transform_11, window_bounds = array<i64: 8, 128>}]} {
    %c0 = arith.constant 0 : index
    %c0_0 = arith.constant 0 : index
    %0 = vector.load %arg1[%c0, %c0_0] : memref<8x128xbf16, #tpu.memory_space<vmem>>, vector<8x128xbf16>
    %c0_1 = arith.constant 0 : index
    %c0_2 = arith.constant 0 : index
    %1 = vector.load %arg2[%c0_1, %c0_2] : memref<128x128xbf16, #tpu.memory_space<vmem>>, vector<128x128xbf16>
    %cst = arith.constant dense<0.000000e+00> : vector<8x128xf32>
    %2 = tpu.matmul %0, %1, %cst {dimension_numbers = #tpu.dot_dimension_numbers<[1], [0], [0], [1], [0, 0, 1, 1], [], []>} : vector<8x128xbf16>, vector<128x128xbf16>, vector<8x128xf32> -> vector<8x128xf32>
    %c0_3 = arith.constant 0 : index
    %c0_4 = arith.constant 0 : index
    %3 = vector.load %arg3[%c0_3, %c0_4] : memref<1x128xf32, #tpu.memory_space<vmem>>, vector<1x128xf32>
    %4 = vector.broadcast %3 : vector<1x128xf32> to vector<8x128xf32>
    %5 = arith.addf %2, %4 : vector<8x128xf32>
    %cst_5 = arith.constant 0.00999999977 : f32
    %6 = vector.broadcast %cst_5 : f32 to vector<8x128xf32>
    %7 = arith.mulf %6, %5 : vector<8x128xf32>
    %8 = arith.maximumf %5, %7 : vector<8x128xf32>
    %9 = arith.truncf %8 : vector<8x128xf32> to vector<8x128xbf16>
    %c0_6 = arith.constant 0 : index
    %c0_7 = arith.constant 0 : index
    %10 = vector.load %arg4[%c0_6, %c0_7] : memref<128x128xbf16, #tpu.memory_space<vmem>>, vector<128x128xbf16>
    %cst_8 = arith.constant dense<0.000000e+00> : vector<8x128xf32>
    %11 = tpu.matmul %9, %10, %cst_8 {dimension_numbers = #tpu.dot_dimension_numbers<[1], [0], [0], [1], [0, 0, 1, 1], [], []>} : vector<8x128xbf16>, vector<128x128xbf16>, vector<8x128xf32> -> vector<8x128xf32>
    %c0_9 = arith.constant 0 : index
    %c0_10 = arith.constant 0 : index
    %12 = vector.load %arg5[%c0_9, %c0_10] : memref<1x128xf32, #tpu.memory_space<vmem>>, vector<1x128xf32>
    %13 = vector.broadcast %12 : vector<1x128xf32> to vector<8x128xf32>
    %14 = arith.addf %11, %13 : vector<8x128xf32>
    %cst_11 = arith.constant 0.00999999977 : f32
    %15 = vector.broadcast %cst_11 : f32 to vector<8x128xf32>
    %16 = arith.mulf %15, %14 : vector<8x128xf32>
    %17 = arith.maximumf %14, %16 : vector<8x128xf32>
    %18 = arith.truncf %17 : vector<8x128xf32> to vector<8x128xbf16>
    %c0_12 = arith.constant 0 : index
    %c0_13 = arith.constant 0 : index
    %19 = vector.load %arg6[%c0_12, %c0_13] : memref<128x128xbf16, #tpu.memory_space<vmem>>, vector<128x128xbf16>
    %cst_14 = arith.constant dense<0.000000e+00> : vector<8x128xf32>
    %20 = tpu.matmul %18, %19, %cst_14 {dimension_numbers = #tpu.dot_dimension_numbers<[1], [0], [0], [1], [0, 0, 1, 1], [], []>} : vector<8x128xbf16>, vector<128x128xbf16>, vector<8x128xf32> -> vector<8x128xf32>
    %c0_15 = arith.constant 0 : index
    %c0_16 = arith.constant 0 : index
    %21 = vector.load %arg7[%c0_15, %c0_16] : memref<1x128xf32, #tpu.memory_space<vmem>>, vector<1x128xf32>
    %22 = vector.broadcast %21 : vector<1x128xf32> to vector<8x128xf32>
    %23 = arith.addf %20, %22 : vector<8x128xf32>
    %cst_17 = arith.constant 0.00999999977 : f32
    %24 = vector.broadcast %cst_17 : f32 to vector<8x128xf32>
    %25 = arith.mulf %24, %23 : vector<8x128xf32>
    %26 = arith.maximumf %23, %25 : vector<8x128xf32>
    %27 = arith.truncf %26 : vector<8x128xf32> to vector<8x128xbf16>
    %c0_18 = arith.constant 0 : index
    %c0_19 = arith.constant 0 : index
    %28 = vector.load %arg8[%c0_18, %c0_19] : memref<128x128xbf16, #tpu.memory_space<vmem>>, vector<128x128xbf16>
    %cst_20 = arith.constant dense<0.000000e+00> : vector<8x128xf32>
    %29 = tpu.matmul %27, %28, %cst_20 {dimension_numbers = #tpu.dot_dimension_numbers<[1], [0], [0], [1], [0, 0, 1, 1], [], []>} : vector<8x128xbf16>, vector<128x128xbf16>, vector<8x128xf32> -> vector<8x128xf32>
    %c0_21 = arith.constant 0 : index
    %c0_22 = arith.constant 0 : index
    %30 = vector.load %arg9[%c0_21, %c0_22] : memref<1x128xf32, #tpu.memory_space<vmem>>, vector<1x128xf32>
    %31 = vector.broadcast %30 : vector<1x128xf32> to vector<8x128xf32>
    %32 = arith.addf %29, %31 : vector<8x128xf32>
    %cst_23 = arith.constant 0.00999999977 : f32
    %33 = vector.broadcast %cst_23 : f32 to vector<8x128xf32>
    %34 = arith.mulf %33, %32 : vector<8x128xf32>
    %35 = arith.maximumf %32, %34 : vector<8x128xf32>
    %36 = arith.truncf %35 : vector<8x128xf32> to vector<8x128xbf16>
    %c0_24 = arith.constant 0 : index
    %c0_25 = arith.constant 0 : index
    %37 = vector.load %arg10[%c0_24, %c0_25] : memref<128x128xbf16, #tpu.memory_space<vmem>>, vector<128x128xbf16>
    %cst_26 = arith.constant dense<0.000000e+00> : vector<8x128xf32>
    %38 = tpu.matmul %36, %37, %cst_26 {dimension_numbers = #tpu.dot_dimension_numbers<[1], [0], [0], [1], [0, 0, 1, 1], [], []>} : vector<8x128xbf16>, vector<128x128xbf16>, vector<8x128xf32> -> vector<8x128xf32>
    %c0_27 = arith.constant 0 : index
    %c0_28 = arith.constant 0 : index
    %39 = vector.load %arg11[%c0_27, %c0_28] : memref<1x128xf32, #tpu.memory_space<vmem>>, vector<1x128xf32>
    %40 = vector.broadcast %39 : vector<1x128xf32> to vector<8x128xf32>
    %41 = arith.addf %38, %40 : vector<8x128xf32>
    %c0_29 = arith.constant 0 : index
    %c0_30 = arith.constant 0 : index
    %42 = vector.load %arg12[%c0_29, %c0_30] : memref<8x128xf32, #tpu.memory_space<vmem>>, vector<8x128xf32>
    tpu.vector_store %arg12[%c0_29, %c0_30], %41 {strides = array<i32>} : memref<8x128xf32, #tpu.memory_space<vmem>>, vector<8x128xf32>,
    return
  }
  func.func @transform_0(%arg0: i32) -> (i32, i32) {
    %c0_i32 = arith.constant 0 : i32
    %c0_i32_0 = arith.constant 0 : i32
    return %arg0, %c0_i32 : i32, i32
  }
  func.func @transform_1(%arg0: i32) -> (i32, i32) {
    %c0_i32 = arith.constant 0 : i32
    %c0_i32_0 = arith.constant 0 : i32
    %c0_i32_1 = arith.constant 0 : i32
    return %c0_i32, %c0_i32_0 : i32, i32
  }
  func.func @transform_2(%arg0: i32) -> (i32, i32) {
    %c0_i32 = arith.constant 0 : i32
    %c0_i32_0 = arith.constant 0 : i32
    %c0_i32_1 = arith.constant 0 : i32
    return %c0_i32, %c0_i32_0 : i32, i32
  }
  func.func @transform_3(%arg0: i32) -> (i32, i32) {
    %c0_i32 = arith.constant 0 : i32
    %c0_i32_0 = arith.constant 0 : i32
    %c0_i32_1 = arith.constant 0 : i32
    return %c0_i32, %c0_i32_0 : i32, i32
  }
  func.func @transform_4(%arg0: i32) -> (i32, i32) {
    %c0_i32 = arith.constant 0 : i32
    %c0_i32_0 = arith.constant 0 : i32
    %c0_i32_1 = arith.constant 0 : i32
    return %c0_i32, %c0_i32_0 : i32, i32
  }
  func.func @transform_5(%arg0: i32) -> (i32, i32) {
    %c0_i32 = arith.constant 0 : i32
    %c0_i32_0 = arith.constant 0 : i32
    %c0_i32_1 = arith.constant 0 : i32
    return %c0_i32, %c0_i32_0 : i32, i32
  }
  func.func @transform_6(%arg0: i32) -> (i32, i32) {
    %c0_i32 = arith.constant 0 : i32
    %c0_i32_0 = arith.constant 0 : i32
    %c0_i32_1 = arith.constant 0 : i32
    return %c0_i32, %c0_i32_0 : i32, i32
  }
  func.func @transform_7(%arg0: i32) -> (i32, i32) {
    %c0_i32 = arith.constant 0 : i32
    %c0_i32_0 = arith.constant 0 : i32
    %c0_i32_1 = arith.constant 0 : i32
    return %c0_i32, %c0_i32_0 : i32, i32
  }
  func.func @transform_8(%arg0: i32) -> (i32, i32) {
    %c0_i32 = arith.constant 0 : i32
    %c0_i32_0 = arith.constant 0 : i32
    %c0_i32_1 = arith.constant 0 : i32
    return %c0_i32, %c0_i32_0 : i32, i32
  }
  func.func @transform_9(%arg0: i32) -> (i32, i32) {
    %c0_i32 = arith.constant 0 : i32
    %c0_i32_0 = arith.constant 0 : i32
    %c0_i32_1 = arith.constant 0 : i32
    return %c0_i32, %c0_i32_0 : i32, i32
  }
  func.func @transform_10(%arg0: i32) -> (i32, i32) {
    %c0_i32 = arith.constant 0 : i32
    %c0_i32_0 = arith.constant 0 : i32
    %c0_i32_1 = arith.constant 0 : i32
    return %c0_i32, %c0_i32_0 : i32, i32
  }
  func.func @transform_11(%arg0: i32) -> (i32, i32) {
    %c0_i32 = arith.constant 0 : i32
    %c0_i32_0 = arith.constant 0 : i32
    return %arg0, %c0_i32 : i32, i32
  }
}

module attributes {stable_mosaic.version = 11 : i64} {
  func.func @mlp_kernel(%arg0: i32, %arg1: memref<8x128xbf16, #tpu.memory_space<vmem>>, %arg2: memref<128x128xbf16, #tpu.memory_space<vmem>>, %arg3: memref<1x128xf32, #tpu.memory_space<vmem>>, %arg4: memref<128x128xbf16, #tpu.memory_space<vmem>>, %arg5: memref<1x128xf32, #tpu.memory_space<vmem>>, %arg6: memref<128x128xbf16, #tpu.memory_space<vmem>>, %arg7: memref<1x128xf32, #tpu.memory_space<vmem>>, %arg8: memref<128x128xbf16, #tpu.memory_space<vmem>>, %arg9: memref<1x128xf32, #tpu.memory_space<vmem>>, %arg10: memref<128x128xbf16, #tpu.memory_space<vmem>>, %arg11: memref<1x128xf32, #tpu.memory_space<vmem>>, %arg12: memref<8x128xf32, #tpu.memory_space<vmem>>) attributes {dimension_semantics = [#tpu.dimension_semantics<parallel>], iteration_bounds = array<i64: 1>, scalar_prefetch = 0 : i64, scratch_operands = 0 : i64, tpu.core_type = #tpu.core_type<tc>, window_params = [{transform_indices = @transform_0, window_bounds = array<i64: 8, 128>}, {pipeline_mode = #tpu.pipeline_mode<synchronous>, transform_indices = @transform_1, window_bounds = array<i64: 128, 128>}, {pipeline_mode = #tpu.pipeline_mode<synchronous>, transform_indices = @transform_2, window_bounds = array<i64: 1, 128>}, {pipeline_mode = #tpu.pipeline_mode<synchronous>, transform_indices = @transform_3, window_bounds = array<i64: 128, 128>}, {pipeline_mode = #tpu.pipeline_mode<synchronous>, transform_indices = @transform_4, window_bounds = array<i64: 1, 128>}, {pipeline_mode = #tpu.pipeline_mode<synchronous>, transform_indices = @transform_5, window_bounds = array<i64: 128, 128>}, {pipeline_mode = #tpu.pipeline_mode<synchronous>, transform_indices = @transform_6, window_bounds = array<i64: 1, 128>}, {pipeline_mode = #tpu.pipeline_mode<synchronous>, transform_indices = @transform_7, window_bounds = array<i64: 128, 128>}, {pipeline_mode = #tpu.pipeline_mode<synchronous>, transform_indices = @transform_8, window_bounds = array<i64: 1, 128>}, {pipeline_mode = #tpu.pipeline_mode<synchronous>, transform_indices = @transform_9, window_bounds = array<i64: 128, 128>}, {pipeline_mode = #tpu.pipeline_mode<synchronous>, transform_indices = @transform_10, window_bounds = array<i64: 1, 128>}, {transform_indices = @transform_11, window_bounds = array<i64: 8, 128>}]} {
    %c0 = arith.constant 0 : index
    %c0_0 = arith.constant 0 : index
    %0 = vector.load %arg1[%c0, %c0_0] : memref<8x128xbf16, #tpu.memory_space<vmem>>, vector<8x128xbf16>
    %c0_1 = arith.constant 0 : index
    %c0_2 = arith.constant 0 : index
    %1 = vector.load %arg2[%c0_1, %c0_2] : memref<128x128xbf16, #tpu.memory_space<vmem>>, vector<128x128xbf16>
    %cst = arith.constant dense<0.000000e+00> : vector<8x128xf32>
    %2 = tpu.matmul %0, %1, %cst {dimension_numbers = #tpu.dot_dimension_numbers<[1], [0], [0], [1], [0, 0, 1, 1], [], []>} : vector<8x128xbf16>, vector<128x128xbf16>, vector<8x128xf32> -> vector<8x128xf32>
    %c0_3 = arith.constant 0 : index
    %c0_4 = arith.constant 0 : index
    %3 = vector.load %arg3[%c0_3, %c0_4] : memref<1x128xf32, #tpu.memory_space<vmem>>, vector<1x128xf32>
    %4 = vector.broadcast %3 : vector<1x128xf32> to vector<8x128xf32>
    %5 = arith.addf %2, %4 : vector<8x128xf32>
    %cst_5 = arith.constant 0.00999999977 : f32
    %6 = vector.broadcast %cst_5 : f32 to vector<8x128xf32>
    %7 = arith.mulf %6, %5 : vector<8x128xf32>
    %8 = arith.maximumf %5, %7 : vector<8x128xf32>
    %9 = arith.truncf %8 : vector<8x128xf32> to vector<8x128xbf16>
    %c0_6 = arith.constant 0 : index
    %c0_7 = arith.constant 0 : index
    %10 = vector.load %arg4[%c0_6, %c0_7] : memref<128x128xbf16, #tpu.memory_space<vmem>>, vector<128x128xbf16>
    %cst_8 = arith.constant dense<0.000000e+00> : vector<8x128xf32>
    %11 = tpu.matmul %9, %10, %cst_8 {dimension_numbers = #tpu.dot_dimension_numbers<[1], [0], [0], [1], [0, 0, 1, 1], [], []>} : vector<8x128xbf16>, vector<128x128xbf16>, vector<8x128xf32> -> vector<8x128xf32>
    %c0_9 = arith.constant 0 : index
    %c0_10 = arith.constant 0 : index
    %12 = vector.load %arg5[%c0_9, %c0_10] : memref<1x128xf32, #tpu.memory_space<vmem>>, vector<1x128xf32>
    %13 = vector.broadcast %12 : vector<1x128xf32> to vector<8x128xf32>
    %14 = arith.addf %11, %13 : vector<8x128xf32>
    %cst_11 = arith.constant 0.00999999977 : f32
    %15 = vector.broadcast %cst_11 : f32 to vector<8x128xf32>
    %16 = arith.mulf %15, %14 : vector<8x128xf32>
    %17 = arith.maximumf %14, %16 : vector<8x128xf32>
    %18 = arith.truncf %17 : vector<8x128xf32> to vector<8x128xbf16>
    %c0_12 = arith.constant 0 : index
    %c0_13 = arith.constant 0 : index
    %19 = vector.load %arg6[%c0_12, %c0_13] : memref<128x128xbf16, #tpu.memory_space<vmem>>, vector<128x128xbf16>
    %cst_14 = arith.constant dense<0.000000e+00> : vector<8x128xf32>
    %20 = tpu.matmul %18, %19, %cst_14 {dimension_numbers = #tpu.dot_dimension_numbers<[1], [0], [0], [1], [0, 0, 1, 1], [], []>} : vector<8x128xbf16>, vector<128x128xbf16>, vector<8x128xf32> -> vector<8x128xf32>
    %c0_15 = arith.constant 0 : index
    %c0_16 = arith.constant 0 : index
    %21 = vector.load %arg7[%c0_15, %c0_16] : memref<1x128xf32, #tpu.memory_space<vmem>>, vector<1x128xf32>
    %22 = vector.broadcast %21 : vector<1x128xf32> to vector<8x128xf32>
    %23 = arith.addf %20, %22 : vector<8x128xf32>
    %cst_17 = arith.constant 0.00999999977 : f32
    %24 = vector.broadcast %cst_17 : f32 to vector<8x128xf32>
    %25 = arith.mulf %24, %23 : vector<8x128xf32>
    %26 = arith.maximumf %23, %25 : vector<8x128xf32>
    %27 = arith.truncf %26 : vector<8x128xf32> to vector<8x128xbf16>
    %c0_18 = arith.constant 0 : index
    %c0_19 = arith.constant 0 : index
    %28 = vector.load %arg8[%c0_18, %c0_19] : memref<128x128xbf16, #tpu.memory_space<vmem>>, vector<128x128xbf16>
    %cst_20 = arith.constant dense<0.000000e+00> : vector<8x128xf32>
    %29 = tpu.matmul %27, %28, %cst_20 {dimension_numbers = #tpu.dot_dimension_numbers<[1], [0], [0], [1], [0, 0, 1, 1], [], []>} : vector<8x128xbf16>, vector<128x128xbf16>, vector<8x128xf32> -> vector<8x128xf32>
    %c0_21 = arith.constant 0 : index
    %c0_22 = arith.constant 0 : index
    %30 = vector.load %arg9[%c0_21, %c0_22] : memref<1x128xf32, #tpu.memory_space<vmem>>, vector<1x128xf32>
    %31 = vector.broadcast %30 : vector<1x128xf32> to vector<8x128xf32>
    %32 = arith.addf %29, %31 : vector<8x128xf32>
    %cst_23 = arith.constant 0.00999999977 : f32
    %33 = vector.broadcast %cst_23 : f32 to vector<8x128xf32>
    %34 = arith.mulf %33, %32 : vector<8x128xf32>
    %35 = arith.maximumf %32, %34 : vector<8x128xf32>
    %36 = arith.truncf %35 : vector<8x128xf32> to vector<8x128xbf16>
    %c0_24 = arith.constant 0 : index
    %c0_25 = arith.constant 0 : index
    %37 = vector.load %arg10[%c0_24, %c0_25] : memref<128x128xbf16, #tpu.memory_space<vmem>>, vector<128x128xbf16>
    %cst_26 = arith.constant dense<0.000000e+00> : vector<8x128xf32>
    %38 = tpu.matmul %36, %37, %cst_26 {dimension_numbers = #tpu.dot_dimension_numbers<[1], [0], [0], [1], [0, 0, 1, 1], [], []>} : vector<8x128xbf16>, vector<128x128xbf16>, vector<8x128xf32> -> vector<8x128xf32>
    %c0_27 = arith.constant 0 : index
    %c0_28 = arith.constant 0 : index
    %39 = vector.load %arg11[%c0_27, %c0_28] : memref<1x128xf32, #tpu.memory_space<vmem>>, vector<1x128xf32>
    %40 = vector.broadcast %39 : vector<1x128xf32> to vector<8x128xf32>
    %41 = arith.addf %38, %40 : vector<8x128xf32>
    %c0_29 = arith.constant 0 : index
    %c0_30 = arith.constant 0 : index
    %42 = vector.load %arg12[%c0_29, %c0_30] : memref<8x128xf32, #tpu.memory_space<vmem>>, vector<8x128xf32>
    tpu.vector_store %arg12[%c0_29, %c0_30], %41 {strides = array<i32>} : memref<8x128xf32, #tpu.memory_space<vmem>>, vector<8x128xf32>,
    return
  }
  func.func @transform_0(%arg0: i32) -> (i32, i32) {
    %c0_i32 = arith.constant 0 : i32
    %c0_i32_0 = arith.constant 0 : i32
    return %arg0, %c0_i32 : i32, i32
  }
  func.func @transform_1(%arg0: i32) -> (i32, i32) {
    %c0_i32 = arith.constant 0 : i32
    %c0_i32_0 = arith.constant 0 : i32
    %c0_i32_1 = arith.constant 0 : i32
    return %c0_i32, %c0_i32_0 : i32, i32
  }
  func.func @transform_2(%arg0: i32) -> (i32, i32) {
    %c0_i32 = arith.constant 0 : i32
    %c0_i32_0 = arith.constant 0 : i32
    %c0_i32_1 = arith.constant 0 : i32
    return %c0_i32, %c0_i32_0 : i32, i32
  }
  func.func @transform_3(%arg0: i32) -> (i32, i32) {
    %c0_i32 = arith.constant 0 : i32
    %c0_i32_0 = arith.constant 0 : i32
    %c0_i32_1 = arith.constant 0 : i32
    return %c0_i32, %c0_i32_0 : i32, i32
  }
  func.func @transform_4(%arg0: i32) -> (i32, i32) {
    %c0_i32 = arith.constant 0 : i32
    %c0_i32_0 = arith.constant 0 : i32
    %c0_i32_1 = arith.constant 0 : i32
    return %c0_i32, %c0_i32_0 : i32, i32
  }
  func.func @transform_5(%arg0: i32) -> (i32, i32) {
    %c0_i32 = arith.constant 0 : i32
    %c0_i32_0 = arith.constant 0 : i32
    %c0_i32_1 = arith.constant 0 : i32
    return %c0_i32, %c0_i32_0 : i32, i32
  }
  func.func @transform_6(%arg0: i32) -> (i32, i32) {
    %c0_i32 = arith.constant 0 : i32
    %c0_i32_0 = arith.constant 0 : i32
    %c0_i32_1 = arith.constant 0 : i32
    return %c0_i32, %c0_i32_0 : i32, i32
  }
  func.func @transform_7(%arg0: i32) -> (i32, i32) {
    %c0_i32 = arith.constant 0 : i32
    %c0_i32_0 = arith.constant 0 : i32
    %c0_i32_1 = arith.constant 0 : i32
    return %c0_i32, %c0_i32_0 : i32, i32
  }
  func.func @transform_8(%arg0: i32) -> (i32, i32) {
    %c0_i32 = arith.constant 0 : i32
    %c0_i32_0 = arith.constant 0 : i32
    %c0_i32_1 = arith.constant 0 : i32
    return %c0_i32, %c0_i32_0 : i32, i32
  }
  func.func @transform_9(%arg0: i32) -> (i32, i32) {
    %c0_i32 = arith.constant 0 : i32
    %c0_i32_0 = arith.constant 0 : i32
    %c0_i32_1 = arith.constant 0 : i32
    return %c0_i32, %c0_i32_0 : i32, i32
  }
  func.func @transform_10(%arg0: i32) -> (i32, i32) {
    %c0_i32 = arith.constant 0 : i32
    %c0_i32_0 = arith.constant 0 : i32
    %c0_i32_1 = arith.constant 0 : i32
    return %c0_i32, %c0_i32_0 : i32, i32
  }
  func.func @transform_11(%arg0: i32) -> (i32, i32) {
    %c0_i32 = arith.constant 0 : i32
    %c0_i32_0 = arith.constant 0 : i32
    return %arg0, %c0_i32 : i32, i32
  }
}

</mosaic_0001>

<llo_original>
// kernel: basic_mlp_forward.1
$region0: #{basic_mlp_forward.1}
  #allocation0 [shape = 'u32[]', space=smem, size = 0x4, offset = 0x4, fixed_abs, tag = 'smem constant byte address 0x4 - core index']
  #allocation1 [shape = 'u32[144,128]{1,0:T(1,128)}', space=vmem, size = 0x12000, scoped, tag = 'internal scratch']
  %s0 = inlined_call_operand.vmem [shape: bf16[8,128], index: 0, kind: input, shape index: {}]
  %s1 = inlined_call_operand.hbm [shape: bf16[128,128], index: 1, kind: input, shape index: {}]
  %s2 = inlined_call_operand.vmem [shape: f32[1,128], index: 2, kind: input, shape index: {}]
  %s3 = inlined_call_operand.hbm [shape: bf16[128,128], index: 3, kind: input, shape index: {}]
  %s4 = inlined_call_operand.vmem [shape: f32[1,128], index: 4, kind: input, shape index: {}]
  %s5 = inlined_call_operand.hbm [shape: bf16[128,128], index: 5, kind: input, shape index: {}]
  %s6 = inlined_call_operand.vmem [shape: f32[1,128], index: 6, kind: input, shape index: {}]
  %s7 = inlined_call_operand.hbm [shape: bf16[128,128], index: 7, kind: input, shape index: {}]
  %s8 = inlined_call_operand.vmem [shape: f32[1,128], index: 8, kind: input, shape index: {}]
  %s9 = inlined_call_operand.hbm [shape: bf16[128,128], index: 9, kind: input, shape index: {}]
  %s10 = inlined_call_operand.vmem [shape: f32[1,128], index: 10, kind: input, shape index: {}]
  %s11 = inlined_call_operand.hbm [shape: f32[8,128], index: 11, kind: output, shape index: {}]
  %s12 = sld [smem:[#allocation0]]
  $region74: #{basic_mlp_forward.1} parent=0
    _
  %s14 = ssub.s32 1, %s12
  %s15 = scalar_select 0, %s14, %s12
  $region1: #{basic_mlp_forward.1} parent=0
    #allocation2 [shape = 'u8[32768]{0}', space=vmem, size = 0x8000, scoped, tag = 'input window, operand 1, single buffered']
    #allocation3 [shape = 's32[1]{0}', space=sflag, size = 0x4, scoped, tag = 'scoped memory for basic_mlp_forward.1']
    #allocation4 [shape = 's32[1]{0}', space=sflag, size = 0x4, scoped, tag = 'scoped memory for basic_mlp_forward.1']
    #allocation5 [shape = 'u8[32768]{0}', space=vmem, size = 0x8000, scoped, tag = 'input window, operand 3, single buffered']
    #allocation6 [shape = 's32[1]{0}', space=sflag, size = 0x4, scoped, tag = 'scoped memory for basic_mlp_forward.1']
    #allocation7 [shape = 'u8[32768]{0}', space=vmem, size = 0x8000, scoped, tag = 'input window, operand 5, single buffered']
    #allocation8 [shape = 'u8[32768]{0}', space=vmem, size = 0x8000, scoped, tag = 'input window, operand 7, single buffered']
    #allocation9 [shape = 's32[1]{0}', space=sflag, size = 0x4, scoped, tag = 'scoped memory for basic_mlp_forward.1']
    #allocation10 [shape = 'u8[32768]{0}', space=vmem, size = 0x8000, scoped, tag = 'input window, operand 9, single buffered']
    #allocation11 [shape = 'u8[4096]{0}', space=vmem, size = 0x1000, scoped, tag = 'output window, operand 0, single buffered']
    %16 = vsyncpa [#allocation3], 0
    %17 = vsyncpa [#allocation6], 0
    %18 = vsyncpa [#allocation9], 0
    %19 = vsyncpa [#allocation4], 0
    // Predicated region
    $region2: #{basic_mlp_forward.1} parent=1 // pred_check
      _
    $region3: #{basic_mlp_forward.1} parent=1 // pred_check_branch
      %21 = sbr.rel (0) target = $region5
    $region4: #{basic_mlp_forward.1} parent=1 // pred_region
      _
    $region5: #{basic_mlp_forward.1} parent=1 // pred_fallthru
      _
    // Predicated region
    $region6: #{basic_mlp_forward.1} parent=1 // pred_check
      _
    $region7: #{basic_mlp_forward.1} parent=1 // pred_check_branch
      %23 = sbr.rel (0) target = $region9
    $region8: #{basic_mlp_forward.1} parent=1 // pred_region
      %s25 = ssub.s32 1024, 1024
      %26 = vsyncadd [#allocation3], %s25
      %s27 = sshll.u32 [#allocation2], 4
      %s28 = int_to_ptr.vmem [resolvable:$true] %s27
      %33 = dma.hbm_to_vmem [thread:$0]  %s1, 1024, %s28, [#allocation3], 64, 64, 4
    $region9: #{basic_mlp_forward.1} parent=1 // pred_fallthru
      _
    // Predicated region
    $region10: #{basic_mlp_forward.1} parent=1 // pred_check
      _
    $region11: #{basic_mlp_forward.1} parent=1 // pred_check_branch
      %35 = sbr.rel (0) target = $region13
    $region12: #{basic_mlp_forward.1} parent=1 // pred_region
      _
    $region13: #{basic_mlp_forward.1} parent=1 // pred_fallthru
      _
    // Predicated region
    $region14: #{basic_mlp_forward.1} parent=1 // pred_check
      _
    $region15: #{basic_mlp_forward.1} parent=1 // pred_check_branch
      %37 = sbr.rel (0) target = $region17
    $region16: #{basic_mlp_forward.1} parent=1 // pred_region
      %s39 = ssub.s32 1024, 1024
      %40 = vsyncadd [#allocation6], %s39
      %s41 = sshll.u32 [#allocation5], 4
      %s42 = int_to_ptr.vmem [resolvable:$true] %s41
      %47 = dma.hbm_to_vmem [thread:$0]  %s3, 1024, %s42, [#allocation6], 64, 64, 4
    $region17: #{basic_mlp_forward.1} parent=1 // pred_fallthru
      _
    // Predicated region
    $region18: #{basic_mlp_forward.1} parent=1 // pred_check
      _
    $region19: #{basic_mlp_forward.1} parent=1 // pred_check_branch
      %49 = sbr.rel (0) target = $region21
    $region20: #{basic_mlp_forward.1} parent=1 // pred_region
      _
    $region21: #{basic_mlp_forward.1} parent=1 // pred_fallthru
      _
    // Predicated region
    $region22: #{basic_mlp_forward.1} parent=1 // pred_check
      _
    $region23: #{basic_mlp_forward.1} parent=1 // pred_check_branch
      %51 = sbr.rel (0) target = $region25
    $region24: #{basic_mlp_forward.1} parent=1 // pred_region
      %s53 = ssub.s32 1024, 1024
      %54 = vsyncadd [#allocation6], %s53
      %s55 = sshll.u32 [#allocation7], 4
      %s56 = int_to_ptr.vmem [resolvable:$true] %s55
      %61 = dma.hbm_to_vmem [thread:$0]  %s5, 1024, %s56, [#allocation6], 64, 64, 4
    $region25: #{basic_mlp_forward.1} parent=1 // pred_fallthru
      _
    // Predicated region
    $region26: #{basic_mlp_forward.1} parent=1 // pred_check
      _
    $region27: #{basic_mlp_forward.1} parent=1 // pred_check_branch
      %63 = sbr.rel (0) target = $region29
    $region28: #{basic_mlp_forward.1} parent=1 // pred_region
      _
    $region29: #{basic_mlp_forward.1} parent=1 // pred_fallthru
      _
    // Predicated region
    $region30: #{basic_mlp_forward.1} parent=1 // pred_check
      _
    $region31: #{basic_mlp_forward.1} parent=1 // pred_check_branch
      %65 = sbr.rel (0) target = $region33
    $region32: #{basic_mlp_forward.1} parent=1 // pred_region
      %s67 = ssub.s32 1024, 1024
      %68 = vsyncadd [#allocation9], %s67
      %s69 = sshll.u32 [#allocation8], 4
      %s70 = int_to_ptr.vmem [resolvable:$true] %s69
      %75 = dma.hbm_to_vmem [thread:$0]  %s7, 1024, %s70, [#allocation9], 64, 64, 4
    $region33: #{basic_mlp_forward.1} parent=1 // pred_fallthru
      _
    // Predicated region
    $region34: #{basic_mlp_forward.1} parent=1 // pred_check
      _
    $region35: #{basic_mlp_forward.1} parent=1 // pred_check_branch
      %77 = sbr.rel (0) target = $region37
    $region36: #{basic_mlp_forward.1} parent=1 // pred_region
      _
    $region37: #{basic_mlp_forward.1} parent=1 // pred_fallthru
      _
    // Predicated region
    $region38: #{basic_mlp_forward.1} parent=1 // pred_check
      _
    $region39: #{basic_mlp_forward.1} parent=1 // pred_check_branch
      %79 = sbr.rel (0) target = $region41
    $region40: #{basic_mlp_forward.1} parent=1 // pred_region
      %s81 = ssub.s32 1024, 1024
      %82 = vsyncadd [#allocation9], %s81
      %s83 = sshll.u32 [#allocation10], 4
      %s84 = int_to_ptr.vmem [resolvable:$true] %s83
      %89 = dma.hbm_to_vmem [thread:$0]  %s9, 1024, %s84, [#allocation9], 64, 64, 4
    $region41: #{basic_mlp_forward.1} parent=1 // pred_fallthru
      _
    // Predicated region
    $region42: #{basic_mlp_forward.1} parent=1 // pred_check
      _
    $region43: #{basic_mlp_forward.1} parent=1 // pred_check_branch
      %91 = sbr.rel (0) target = $region45
    $region44: #{basic_mlp_forward.1} parent=1 // pred_region
      _
    $region45: #{basic_mlp_forward.1} parent=1 // pred_fallthru
      _
    // Predicated region
    $region46: #{basic_mlp_forward.1} parent=1 // pred_check
      _
    $region47: #{basic_mlp_forward.1} parent=1 // pred_check_branch
      %93 = sbr.rel (0) target = $region49
    $region48: #{basic_mlp_forward.1} parent=1 // pred_region
      %94 = dma.done [#allocation3], 1024
    $region49: #{basic_mlp_forward.1} parent=1 // pred_fallthru
      _
    // Predicated region
    $region50: #{basic_mlp_forward.1} parent=1 // pred_check
      _
    $region51: #{basic_mlp_forward.1} parent=1 // pred_check_branch
      %96 = sbr.rel (0) target = $region53
    $region52: #{basic_mlp_forward.1} parent=1 // pred_region
      %97 = dma.done [#allocation6], 1024
    $region53: #{basic_mlp_forward.1} parent=1 // pred_fallthru
      _
    // Predicated region
    $region54: #{basic_mlp_forward.1} parent=1 // pred_check
      _
    $region55: #{basic_mlp_forward.1} parent=1 // pred_check_branch
      %99 = sbr.rel (0) target = $region57
    $region56: #{basic_mlp_forward.1} parent=1 // pred_region
      %100 = dma.done [#allocation6], 1024
    $region57: #{basic_mlp_forward.1} parent=1 // pred_fallthru
      _
    // Predicated region
    $region58: #{basic_mlp_forward.1} parent=1 // pred_check
      _
    $region59: #{basic_mlp_forward.1} parent=1 // pred_check_branch
      %102 = sbr.rel (0) target = $region61
    $region60: #{basic_mlp_forward.1} parent=1 // pred_region
      %103 = dma.done [#allocation9], 1024
    $region61: #{basic_mlp_forward.1} parent=1 // pred_fallthru
      _
    // Predicated region
    $region62: #{basic_mlp_forward.1} parent=1 // pred_check
      _
    $region63: #{basic_mlp_forward.1} parent=1 // pred_check_branch
      %105 = sbr.rel (0) target = $region65
    $region64: #{basic_mlp_forward.1} parent=1 // pred_region
      %106 = dma.done [#allocation9], 1024
    $region65: #{basic_mlp_forward.1} parent=1 // pred_fallthru
      _
    %v108 = vld [vmem:[%s0] sm:$0xf]
    %v109 = vld [vmem:[#allocation2] sm:$0xf]
    %v110 = vld [vmem:[#allocation2 + $0x4] sm:$0xf]
    %v111 = vld [vmem:[#allocation2 + $0x8] sm:$0xf]
    %v112 = vld [vmem:[#allocation2 + $0xc] sm:$0xf]
    %v113 = vld [vmem:[#allocation2 + $0x10] sm:$0xf]
    %v114 = vld [vmem:[#allocation2 + $0x14] sm:$0xf]
    %v115 = vld [vmem:[#allocation2 + $0x18] sm:$0xf]
    %v116 = vld [vmem:[#allocation2 + $0x1c] sm:$0xf]
    %v117 = vld [vmem:[#allocation2 + $0x20] sm:$0xf]
    %v118 = vld [vmem:[#allocation2 + $0x24] sm:$0xf]
    %v119 = vld [vmem:[#allocation2 + $0x28] sm:$0xf]
    %v120 = vld [vmem:[#allocation2 + $0x2c] sm:$0xf]
    %v121 = vld [vmem:[#allocation2 + $0x30] sm:$0xf]
    %v122 = vld [vmem:[#allocation2 + $0x34] sm:$0xf]
    %v123 = vld [vmem:[#allocation2 + $0x38] sm:$0xf]
    %v124 = vld [vmem:[#allocation2 + $0x3c] sm:$0xf]
    %v125 = vld [vmem:[%s2] sm:$0x1]
    %v127 = vlaneseq
    %v128 = vshrl.u32 %v127, 7
    %v129 = vsub.s32 0, %v128
    %v130 = vrot.slane %v125, %v129
    %v148 = vunpack.c.l.b16 %v109
    %v149 = vunpack.c.l.b16 %v110
    %v150 = vunpack.c.l.b16 %v111
    %v151 = vunpack.c.l.b16 %v112
    %v152 = vunpack.c.l.b16 %v113
    %v153 = vunpack.c.l.b16 %v114
    %v154 = vunpack.c.l.b16 %v115
    %v155 = vunpack.c.l.b16 %v116
    %v156 = vunpack.c.l.b16 %v117
    %v157 = vunpack.c.l.b16 %v118
    %v158 = vunpack.c.l.b16 %v119
    %v159 = vunpack.c.l.b16 %v120
    %v160 = vunpack.c.l.b16 %v121
    %v161 = vunpack.c.l.b16 %v122
    %v162 = vunpack.c.l.b16 %v123
    %v163 = vunpack.c.l.b16 %v124
    %v164 = vpack.c.b16 %v149, %v148
    %v165 = vpack.c.b16 %v151, %v150
    %v166 = vpack.c.b16 %v153, %v152
    %v167 = vpack.c.b16 %v155, %v154
    %v168 = vpack.c.b16 %v157, %v156
    %v169 = vpack.c.b16 %v159, %v158
    %v170 = vpack.c.b16 %v161, %v160
    %v171 = vpack.c.b16 %v163, %v162
    %180 = vmatprep.subr.bf16.mxu0 0
    %181 = vmatpush1.bf16.msra.mxu0 %v171
    %182 = vmatprep.subr.bf16.mxu0 0
    %183 = vmatpush1.bf16.msra.mxu0 %v170
    %184 = vmatprep.subr.bf16.mxu0 0
    %185 = vmatpush1.bf16.msra.mxu0 %v169
    %186 = vmatprep.subr.bf16.mxu0 0
    %187 = vmatpush1.bf16.msra.mxu0 %v168
    %188 = vmatprep.subr.bf16.mxu0 0
    %189 = vmatpush1.bf16.msra.mxu0 %v167
    %190 = vmatprep.subr.bf16.mxu0 0
    %191 = vmatpush1.bf16.msra.mxu0 %v166
    %192 = vmatprep.subr.bf16.mxu0 0
    %193 = vmatpush1.bf16.msra.mxu0 %v165
    %194 = vmatprep.subr.bf16.mxu0 0
    %195 = vmatpush1.bf16.msra.mxu0 %v164
    %196 = vmatprep.subr.bf16.mxu0 0
    %197 = vmatpush2.bf16.msra.mxu0 0
    %198 = vmatprep.subr.bf16.mxu0 0
    %199 = vmatpush2.bf16.msra.mxu0 0
    %200 = vmatprep.subr.bf16.mxu0 0
    %201 = vmatpush2.bf16.msra.mxu0 0
    %202 = vmatprep.subr.bf16.mxu0 0
    %203 = vmatpush2.bf16.msra.mxu0 0
    %204 = vmatprep.subr.bf16.mxu0 0
    %205 = vmatpush2.bf16.msra.mxu0 0
    %206 = vmatprep.subr.bf16.mxu0 0
    %207 = vmatpush2.bf16.msra.mxu0 0
    %208 = vmatprep.subr.bf16.mxu0 0
    %209 = vmatpush2.bf16.msra.mxu0 0
    %210 = vmatprep.subr.bf16.mxu0 0
    %211 = vmatpush2.bf16.msra.mxu0 0
    %212 = vmatprep.mubr.bf16.mxu0 0
    %213 = vmatmul.mubr.bf16.gmra.mxu0 %v108
    %v214 = vpop.f32.mrf.mxu0
    %v215 = vadd.f32 %v130, %v214
    %v216 = vpop.f32.mrf.mxu0
    %v217 = vpop.f32.mrf.mxu0
    %v218 = vpop.f32.mrf.mxu0
    %219 = vdwg.mxu0
    %v220 = vmul.f32 %v215, 0.01
    %v221 = vmax.f32 %v215, %v220
    %v222 = vpack.c.bf16 %v221, %v221
    %v223 = vld [vmem:[#allocation5] sm:$0xf]
    %v224 = vld [vmem:[#allocation5 + $0x4] sm:$0xf]
    %v225 = vld [vmem:[#allocation5 + $0x8] sm:$0xf]
    %v226 = vld [vmem:[#allocation5 + $0xc] sm:$0xf]
    %v227 = vld [vmem:[#allocation5 + $0x10] sm:$0xf]
    %v228 = vld [vmem:[#allocation5 + $0x14] sm:$0xf]
    %v229 = vld [vmem:[#allocation5 + $0x18] sm:$0xf]
    %v230 = vld [vmem:[#allocation5 + $0x1c] sm:$0xf]
    %v231 = vld [vmem:[#allocation5 + $0x20] sm:$0xf]
    %v232 = vld [vmem:[#allocation5 + $0x24] sm:$0xf]
    %v233 = vld [vmem:[#allocation5 + $0x28] sm:$0xf]
    %v234 = vld [vmem:[#allocation5 + $0x2c] sm:$0xf]
    %v235 = vld [vmem:[#allocation5 + $0x30] sm:$0xf]
    %v236 = vld [vmem:[#allocation5 + $0x34] sm:$0xf]
    %v237 = vld [vmem:[#allocation5 + $0x38] sm:$0xf]
    %v238 = vld [vmem:[#allocation5 + $0x3c] sm:$0xf]
    %v239 = vld [vmem:[%s4] sm:$0x1]
    %v241 = vlaneseq
    %v242 = vshrl.u32 %v241, 7
    %v243 = vsub.s32 0, %v242
    %v244 = vrot.slane %v239, %v243
    %v262 = vunpack.c.l.b16 %v223
    %v263 = vunpack.c.l.b16 %v224
    %v264 = vunpack.c.l.b16 %v225
    %v265 = vunpack.c.l.b16 %v226
    %v266 = vunpack.c.l.b16 %v227
    %v267 = vunpack.c.l.b16 %v228
    %v268 = vunpack.c.l.b16 %v229
    %v269 = vunpack.c.l.b16 %v230
    %v270 = vunpack.c.l.b16 %v231
    %v271 = vunpack.c.l.b16 %v232
    %v272 = vunpack.c.l.b16 %v233
    %v273 = vunpack.c.l.b16 %v234
    %v274 = vunpack.c.l.b16 %v235
    %v275 = vunpack.c.l.b16 %v236
    %v276 = vunpack.c.l.b16 %v237
    %v277 = vunpack.c.l.b16 %v238
    %v278 = vpack.c.b16 %v263, %v262
    %v279 = vpack.c.b16 %v265, %v264
    %v280 = vpack.c.b16 %v267, %v266
    %v281 = vpack.c.b16 %v269, %v268
    %v282 = vpack.c.b16 %v271, %v270
    %v283 = vpack.c.b16 %v273, %v272
    %v284 = vpack.c.b16 %v275, %v274
    %v285 = vpack.c.b16 %v277, %v276
    %294 = vmatprep.subr.bf16.mxu0 0
    %295 = vmatpush1.bf16.msra.mxu0 %v285
    %296 = vmatprep.subr.bf16.mxu0 0
    %297 = vmatpush1.bf16.msra.mxu0 %v284
    %298 = vmatprep.subr.bf16.mxu0 0
    %299 = vmatpush1.bf16.msra.mxu0 %v283
    %300 = vmatprep.subr.bf16.mxu0 0
    %301 = vmatpush1.bf16.msra.mxu0 %v282
    %302 = vmatprep.subr.bf16.mxu0 0
    %303 = vmatpush1.bf16.msra.mxu0 %v281
    %304 = vmatprep.subr.bf16.mxu0 0
    %305 = vmatpush1.bf16.msra.mxu0 %v280
    %306 = vmatprep.subr.bf16.mxu0 0
    %307 = vmatpush1.bf16.msra.mxu0 %v279
    %308 = vmatprep.subr.bf16.mxu0 0
    %309 = vmatpush1.bf16.msra.mxu0 %v278
    %310 = vmatprep.subr.bf16.mxu0 0
    %311 = vmatpush2.bf16.msra.mxu0 0
    %312 = vmatprep.subr.bf16.mxu0 0
    %313 = vmatpush2.bf16.msra.mxu0 0
    %314 = vmatprep.subr.bf16.mxu0 0
    %315 = vmatpush2.bf16.msra.mxu0 0
    %316 = vmatprep.subr.bf16.mxu0 0
    %317 = vmatpush2.bf16.msra.mxu0 0
    %318 = vmatprep.subr.bf16.mxu0 0
    %319 = vmatpush2.bf16.msra.mxu0 0
    %320 = vmatprep.subr.bf16.mxu0 0
    %321 = vmatpush2.bf16.msra.mxu0 0
    %322 = vmatprep.subr.bf16.mxu0 0
    %323 = vmatpush2.bf16.msra.mxu0 0
    %324 = vmatprep.subr.bf16.mxu0 0
    %325 = vmatpush2.bf16.msra.mxu0 0
    %326 = vmatprep.mubr.bf16.mxu0 0
    %327 = vmatmul.mubr.bf16.gmra.mxu0 %v222
    %v328 = vpop.f32.mrf.mxu0
    %v329 = vadd.f32 %v244, %v328
    %v330 = vpop.f32.mrf.mxu0
    %v331 = vpop.f32.mrf.mxu0
    %v332 = vpop.f32.mrf.mxu0
    %333 = vdwg.mxu0
    %v334 = vmul.f32 %v329, 0.01
    %v335 = vmax.f32 %v329, %v334
    %v336 = vpack.c.bf16 %v335, %v335
    %v337 = vld [vmem:[#allocation7] sm:$0xf]
    %v338 = vld [vmem:[#allocation7 + $0x4] sm:$0xf]
    %v339 = vld [vmem:[#allocation7 + $0x8] sm:$0xf]
    %v340 = vld [vmem:[#allocation7 + $0xc] sm:$0xf]
    %v341 = vld [vmem:[#allocation7 + $0x10] sm:$0xf]
    %v342 = vld [vmem:[#allocation7 + $0x14] sm:$0xf]
    %v343 = vld [vmem:[#allocation7 + $0x18] sm:$0xf]
    %v344 = vld [vmem:[#allocation7 + $0x1c] sm:$0xf]
    %v345 = vld [vmem:[#allocation7 + $0x20] sm:$0xf]
    %v346 = vld [vmem:[#allocation7 + $0x24] sm:$0xf]
    %v347 = vld [vmem:[#allocation7 + $0x28] sm:$0xf]
    %v348 = vld [vmem:[#allocation7 + $0x2c] sm:$0xf]
    %v349 = vld [vmem:[#allocation7 + $0x30] sm:$0xf]
    %v350 = vld [vmem:[#allocation7 + $0x34] sm:$0xf]
    %v351 = vld [vmem:[#allocation7 + $0x38] sm:$0xf]
    %v352 = vld [vmem:[#allocation7 + $0x3c] sm:$0xf]
    %v353 = vld [vmem:[%s6] sm:$0x1]
    %v355 = vlaneseq
    %v356 = vshrl.u32 %v355, 7
    %v357 = vsub.s32 0, %v356
    %v358 = vrot.slane %v353, %v357
    %v376 = vunpack.c.l.b16 %v337
    %v377 = vunpack.c.l.b16 %v338
    %v378 = vunpack.c.l.b16 %v339
    %v379 = vunpack.c.l.b16 %v340
    %v380 = vunpack.c.l.b16 %v341
    %v381 = vunpack.c.l.b16 %v342
    %v382 = vunpack.c.l.b16 %v343
    %v383 = vunpack.c.l.b16 %v344
    %v384 = vunpack.c.l.b16 %v345
    %v385 = vunpack.c.l.b16 %v346
    %v386 = vunpack.c.l.b16 %v347
    %v387 = vunpack.c.l.b16 %v348
    %v388 = vunpack.c.l.b16 %v349
    %v389 = vunpack.c.l.b16 %v350
    %v390 = vunpack.c.l.b16 %v351
    %v391 = vunpack.c.l.b16 %v352
    %v392 = vpack.c.b16 %v377, %v376
    %v393 = vpack.c.b16 %v379, %v378
    %v394 = vpack.c.b16 %v381, %v380
    %v395 = vpack.c.b16 %v383, %v382
    %v396 = vpack.c.b16 %v385, %v384
    %v397 = vpack.c.b16 %v387, %v386
    %v398 = vpack.c.b16 %v389, %v388
    %v399 = vpack.c.b16 %v391, %v390
    %408 = vmatprep.subr.bf16.mxu0 0
    %409 = vmatpush1.bf16.msra.mxu0 %v399
    %410 = vmatprep.subr.bf16.mxu0 0
    %411 = vmatpush1.bf16.msra.mxu0 %v398
    %412 = vmatprep.subr.bf16.mxu0 0
    %413 = vmatpush1.bf16.msra.mxu0 %v397
    %414 = vmatprep.subr.bf16.mxu0 0
    %415 = vmatpush1.bf16.msra.mxu0 %v396
    %416 = vmatprep.subr.bf16.mxu0 0
    %417 = vmatpush1.bf16.msra.mxu0 %v395
    %418 = vmatprep.subr.bf16.mxu0 0
    %419 = vmatpush1.bf16.msra.mxu0 %v394
    %420 = vmatprep.subr.bf16.mxu0 0
    %421 = vmatpush1.bf16.msra.mxu0 %v393
    %422 = vmatprep.subr.bf16.mxu0 0
    %423 = vmatpush1.bf16.msra.mxu0 %v392
    %424 = vmatprep.subr.bf16.mxu0 0
    %425 = vmatpush2.bf16.msra.mxu0 0
    %426 = vmatprep.subr.bf16.mxu0 0
    %427 = vmatpush2.bf16.msra.mxu0 0
    %428 = vmatprep.subr.bf16.mxu0 0
    %429 = vmatpush2.bf16.msra.mxu0 0
    %430 = vmatprep.subr.bf16.mxu0 0
    %431 = vmatpush2.bf16.msra.mxu0 0
    %432 = vmatprep.subr.bf16.mxu0 0
    %433 = vmatpush2.bf16.msra.mxu0 0
    %434 = vmatprep.subr.bf16.mxu0 0
    %435 = vmatpush2.bf16.msra.mxu0 0
    %436 = vmatprep.subr.bf16.mxu0 0
    %437 = vmatpush2.bf16.msra.mxu0 0
    %438 = vmatprep.subr.bf16.mxu0 0
    %439 = vmatpush2.bf16.msra.mxu0 0
    %440 = vmatprep.mubr.bf16.mxu0 0
    %441 = vmatmul.mubr.bf16.gmra.mxu0 %v336
    %v442 = vpop.f32.mrf.mxu0
    %v443 = vadd.f32 %v358, %v442
    %v444 = vpop.f32.mrf.mxu0
    %v445 = vpop.f32.mrf.mxu0
    %v446 = vpop.f32.mrf.mxu0
    %447 = vdwg.mxu0
    %v448 = vmul.f32 %v443, 0.01
    %v449 = vmax.f32 %v443, %v448
    %v450 = vpack.c.bf16 %v449, %v449
    %v451 = vld [vmem:[#allocation8] sm:$0xf]
    %v452 = vld [vmem:[#allocation8 + $0x4] sm:$0xf]
    %v453 = vld [vmem:[#allocation8 + $0x8] sm:$0xf]
    %v454 = vld [vmem:[#allocation8 + $0xc] sm:$0xf]
    %v455 = vld [vmem:[#allocation8 + $0x10] sm:$0xf]
    %v456 = vld [vmem:[#allocation8 + $0x14] sm:$0xf]
    %v457 = vld [vmem:[#allocation8 + $0x18] sm:$0xf]
    %v458 = vld [vmem:[#allocation8 + $0x1c] sm:$0xf]
    %v459 = vld [vmem:[#allocation8 + $0x20] sm:$0xf]
    %v460 = vld [vmem:[#allocation8 + $0x24] sm:$0xf]
    %v461 = vld [vmem:[#allocation8 + $0x28] sm:$0xf]
    %v462 = vld [vmem:[#allocation8 + $0x2c] sm:$0xf]
    %v463 = vld [vmem:[#allocation8 + $0x30] sm:$0xf]
    %v464 = vld [vmem:[#allocation8 + $0x34] sm:$0xf]
    %v465 = vld [vmem:[#allocation8 + $0x38] sm:$0xf]
    %v466 = vld [vmem:[#allocation8 + $0x3c] sm:$0xf]
    %v467 = vld [vmem:[%s8] sm:$0x1]
    %v469 = vlaneseq
    %v470 = vshrl.u32 %v469, 7
    %v471 = vsub.s32 0, %v470
    %v472 = vrot.slane %v467, %v471
    %v490 = vunpack.c.l.b16 %v451
    %v491 = vunpack.c.l.b16 %v452
    %v492 = vunpack.c.l.b16 %v453
    %v493 = vunpack.c.l.b16 %v454
    %v494 = vunpack.c.l.b16 %v455
    %v495 = vunpack.c.l.b16 %v456
    %v496 = vunpack.c.l.b16 %v457
    %v497 = vunpack.c.l.b16 %v458
    %v498 = vunpack.c.l.b16 %v459
    %v499 = vunpack.c.l.b16 %v460
    %v500 = vunpack.c.l.b16 %v461
    %v501 = vunpack.c.l.b16 %v462
    %v502 = vunpack.c.l.b16 %v463
    %v503 = vunpack.c.l.b16 %v464
    %v504 = vunpack.c.l.b16 %v465
    %v505 = vunpack.c.l.b16 %v466
    %v506 = vpack.c.b16 %v491, %v490
    %v507 = vpack.c.b16 %v493, %v492
    %v508 = vpack.c.b16 %v495, %v494
    %v509 = vpack.c.b16 %v497, %v496
    %v510 = vpack.c.b16 %v499, %v498
    %v511 = vpack.c.b16 %v501, %v500
    %v512 = vpack.c.b16 %v503, %v502
    %v513 = vpack.c.b16 %v505, %v504
    %522 = vmatprep.subr.bf16.mxu0 0
    %523 = vmatpush1.bf16.msra.mxu0 %v513
    %524 = vmatprep.subr.bf16.mxu0 0
    %525 = vmatpush1.bf16.msra.mxu0 %v512
    %526 = vmatprep.subr.bf16.mxu0 0
    %527 = vmatpush1.bf16.msra.mxu0 %v511
    %528 = vmatprep.subr.bf16.mxu0 0
    %529 = vmatpush1.bf16.msra.mxu0 %v510
    %530 = vmatprep.subr.bf16.mxu0 0
    %531 = vmatpush1.bf16.msra.mxu0 %v509
    %532 = vmatprep.subr.bf16.mxu0 0
    %533 = vmatpush1.bf16.msra.mxu0 %v508
    %534 = vmatprep.subr.bf16.mxu0 0
    %535 = vmatpush1.bf16.msra.mxu0 %v507
    %536 = vmatprep.subr.bf16.mxu0 0
    %537 = vmatpush1.bf16.msra.mxu0 %v506
    %538 = vmatprep.subr.bf16.mxu0 0
    %539 = vmatpush2.bf16.msra.mxu0 0
    %540 = vmatprep.subr.bf16.mxu0 0
    %541 = vmatpush2.bf16.msra.mxu0 0
    %542 = vmatprep.subr.bf16.mxu0 0
    %543 = vmatpush2.bf16.msra.mxu0 0
    %544 = vmatprep.subr.bf16.mxu0 0
    %545 = vmatpush2.bf16.msra.mxu0 0
    %546 = vmatprep.subr.bf16.mxu0 0
    %547 = vmatpush2.bf16.msra.mxu0 0
    %548 = vmatprep.subr.bf16.mxu0 0
    %549 = vmatpush2.bf16.msra.mxu0 0
    %550 = vmatprep.subr.bf16.mxu0 0
    %551 = vmatpush2.bf16.msra.mxu0 0
    %552 = vmatprep.subr.bf16.mxu0 0
    %553 = vmatpush2.bf16.msra.mxu0 0
    %554 = vmatprep.mubr.bf16.mxu0 0
    %555 = vmatmul.mubr.bf16.gmra.mxu0 %v450
    %v556 = vpop.f32.mrf.mxu0
    %v557 = vadd.f32 %v472, %v556
    %v558 = vpop.f32.mrf.mxu0
    %v559 = vpop.f32.mrf.mxu0
    %v560 = vpop.f32.mrf.mxu0
    %561 = vdwg.mxu0
    %v562 = vmul.f32 %v557, 0.01
    %v563 = vmax.f32 %v557, %v562
    %v564 = vpack.c.bf16 %v563, %v563
    %v565 = vld [vmem:[#allocation10] sm:$0xf]
    %v566 = vld [vmem:[#allocation10 + $0x4] sm:$0xf]
    %v567 = vld [vmem:[#allocation10 + $0x8] sm:$0xf]
    %v568 = vld [vmem:[#allocation10 + $0xc] sm:$0xf]
    %v569 = vld [vmem:[#allocation10 + $0x10] sm:$0xf]
    %v570 = vld [vmem:[#allocation10 + $0x14] sm:$0xf]
    %v571 = vld [vmem:[#allocation10 + $0x18] sm:$0xf]
    %v572 = vld [vmem:[#allocation10 + $0x1c] sm:$0xf]
    %v573 = vld [vmem:[#allocation10 + $0x20] sm:$0xf]
    %v574 = vld [vmem:[#allocation10 + $0x24] sm:$0xf]
    %v575 = vld [vmem:[#allocation10 + $0x28] sm:$0xf]
    %v576 = vld [vmem:[#allocation10 + $0x2c] sm:$0xf]
    %v577 = vld [vmem:[#allocation10 + $0x30] sm:$0xf]
    %v578 = vld [vmem:[#allocation10 + $0x34] sm:$0xf]
    %v579 = vld [vmem:[#allocation10 + $0x38] sm:$0xf]
    %v580 = vld [vmem:[#allocation10 + $0x3c] sm:$0xf]
    %v581 = vld [vmem:[%s10] sm:$0x1]
    %v583 = vlaneseq
    %v584 = vshrl.u32 %v583, 7
    %v585 = vsub.s32 0, %v584
    %v586 = vrot.slane %v581, %v585
    %v604 = vunpack.c.l.b16 %v565
    %v605 = vunpack.c.l.b16 %v566
    %v606 = vunpack.c.l.b16 %v567
    %v607 = vunpack.c.l.b16 %v568
    %v608 = vunpack.c.l.b16 %v569
    %v609 = vunpack.c.l.b16 %v570
    %v610 = vunpack.c.l.b16 %v571
    %v611 = vunpack.c.l.b16 %v572
    %v612 = vunpack.c.l.b16 %v573
    %v613 = vunpack.c.l.b16 %v574
    %v614 = vunpack.c.l.b16 %v575
    %v615 = vunpack.c.l.b16 %v576
    %v616 = vunpack.c.l.b16 %v577
    %v617 = vunpack.c.l.b16 %v578
    %v618 = vunpack.c.l.b16 %v579
    %v619 = vunpack.c.l.b16 %v580
    %v620 = vpack.c.b16 %v605, %v604
    %v621 = vpack.c.b16 %v607, %v606
    %v622 = vpack.c.b16 %v609, %v608
    %v623 = vpack.c.b16 %v611, %v610
    %v624 = vpack.c.b16 %v613, %v612
    %v625 = vpack.c.b16 %v615, %v614
    %v626 = vpack.c.b16 %v617, %v616
    %v627 = vpack.c.b16 %v619, %v618
    %636 = vmatprep.subr.bf16.mxu0 0
    %637 = vmatpush1.bf16.msra.mxu0 %v627
    %638 = vmatprep.subr.bf16.mxu0 0
    %639 = vmatpush1.bf16.msra.mxu0 %v626
    %640 = vmatprep.subr.bf16.mxu0 0
    %641 = vmatpush1.bf16.msra.mxu0 %v625
    %642 = vmatprep.subr.bf16.mxu0 0
    %643 = vmatpush1.bf16.msra.mxu0 %v624
    %644 = vmatprep.subr.bf16.mxu0 0
    %645 = vmatpush1.bf16.msra.mxu0 %v623
    %646 = vmatprep.subr.bf16.mxu0 0
    %647 = vmatpush1.bf16.msra.mxu0 %v622
    %648 = vmatprep.subr.bf16.mxu0 0
    %649 = vmatpush1.bf16.msra.mxu0 %v621
    %650 = vmatprep.subr.bf16.mxu0 0
    %651 = vmatpush1.bf16.msra.mxu0 %v620
    %652 = vmatprep.subr.bf16.mxu0 0
    %653 = vmatpush2.bf16.msra.mxu0 0
    %654 = vmatprep.subr.bf16.mxu0 0
    %655 = vmatpush2.bf16.msra.mxu0 0
    %656 = vmatprep.subr.bf16.mxu0 0
    %657 = vmatpush2.bf16.msra.mxu0 0
    %658 = vmatprep.subr.bf16.mxu0 0
    %659 = vmatpush2.bf16.msra.mxu0 0
    %660 = vmatprep.subr.bf16.mxu0 0
    %661 = vmatpush2.bf16.msra.mxu0 0
    %662 = vmatprep.subr.bf16.mxu0 0
    %663 = vmatpush2.bf16.msra.mxu0 0
    %664 = vmatprep.subr.bf16.mxu0 0
    %665 = vmatpush2.bf16.msra.mxu0 0
    %666 = vmatprep.subr.bf16.mxu0 0
    %667 = vmatpush2.bf16.msra.mxu0 0
    %668 = vmatprep.mubr.bf16.mxu0 0
    %669 = vmatmul.mubr.bf16.gmra.mxu0 %v564
    %v670 = vpop.f32.mrf.mxu0
    %v671 = vadd.f32 %v586, %v670
    %v672 = vpop.f32.mrf.mxu0
    %v673 = vpop.f32.mrf.mxu0
    %v674 = vpop.f32.mrf.mxu0
    %675 = vdwg.mxu0
    %676 = vst [vmem:[#allocation11] sm:$0xff] %v671
    // Predicated region
    $region66: #{basic_mlp_forward.1} parent=1 // pred_check
      _
    $region67: #{basic_mlp_forward.1} parent=1 // pred_check_branch
      %678 = sbr.rel (0) target = $region69
    $region68: #{basic_mlp_forward.1} parent=1 // pred_region
      %s680 = ssub.s32 128, 128
      %681 = vsyncadd [#allocation4], %s680
      %s683 = sshll.u32 [#allocation11], 4
      %s684 = int_to_ptr.vmem [resolvable:$true] %s683
      %686 = dma.vmem_to_hbm [thread:$0]  %s684, 128, %s11, [#allocation4]
    $region69: #{basic_mlp_forward.1} parent=1 // pred_fallthru
      _
    // Predicated region
    $region70: #{basic_mlp_forward.1} parent=1 // pred_check
      _
    $region71: #{basic_mlp_forward.1} parent=1 // pred_check_branch
      %688 = sbr.rel (0) target = $region73
    $region72: #{basic_mlp_forward.1} parent=1 // pred_region
      %689 = dma.done [#allocation4], 128
    $region73: #{basic_mlp_forward.1} parent=1 // pred_fallthru
      _
    %690 = vsyncpa [#allocation3], 1
    %691 = vsyncpa [#allocation6], 1
    %692 = vsyncpa [#allocation9], 1
    %693 = vsyncpa [#allocation4], 1

// kernel: basic_mlp_forward.1
$region0: #{basic_mlp_forward.1}
  #allocation0 [shape = 'u32[]', space=smem, size = 0x4, offset = 0x4, fixed_abs, tag = 'smem constant byte address 0x4 - core index']
  #allocation1 [shape = 'u32[144,128]{1,0:T(1,128)}', space=vmem, size = 0x12000, scoped, tag = 'internal scratch']
  %s0 = inlined_call_operand.vmem [shape: bf16[8,128], index: 0, kind: input, shape index: {}]
  %s1 = inlined_call_operand.hbm [shape: bf16[128,128], index: 1, kind: input, shape index: {}]
  %s2 = inlined_call_operand.vmem [shape: f32[1,128], index: 2, kind: input, shape index: {}]
  %s3 = inlined_call_operand.hbm [shape: bf16[128,128], index: 3, kind: input, shape index: {}]
  %s4 = inlined_call_operand.vmem [shape: f32[1,128], index: 4, kind: input, shape index: {}]
  %s5 = inlined_call_operand.hbm [shape: bf16[128,128], index: 5, kind: input, shape index: {}]
  %s6 = inlined_call_operand.vmem [shape: f32[1,128], index: 6, kind: input, shape index: {}]
  %s7 = inlined_call_operand.hbm [shape: bf16[128,128], index: 7, kind: input, shape index: {}]
  %s8 = inlined_call_operand.vmem [shape: f32[1,128], index: 8, kind: input, shape index: {}]
  %s9 = inlined_call_operand.hbm [shape: bf16[128,128], index: 9, kind: input, shape index: {}]
  %s10 = inlined_call_operand.vmem [shape: f32[1,128], index: 10, kind: input, shape index: {}]
  %s11 = inlined_call_operand.hbm [shape: f32[8,128], index: 11, kind: output, shape index: {}]
  %s12 = sld [smem:[#allocation0]]
  $region74: #{basic_mlp_forward.1} parent=0
    _
  %s14 = ssub.s32 1, %s12
  %s15 = scalar_select 0, %s14, %s12
  $region1: #{basic_mlp_forward.1} parent=0
    #allocation2 [shape = 'u8[32768]{0}', space=vmem, size = 0x8000, scoped, tag = 'input window, operand 1, single buffered']
    #allocation3 [shape = 's32[1]{0}', space=sflag, size = 0x4, scoped, tag = 'scoped memory for basic_mlp_forward.1']
    #allocation4 [shape = 's32[1]{0}', space=sflag, size = 0x4, scoped, tag = 'scoped memory for basic_mlp_forward.1']
    #allocation5 [shape = 'u8[32768]{0}', space=vmem, size = 0x8000, scoped, tag = 'input window, operand 3, single buffered']
    #allocation6 [shape = 's32[1]{0}', space=sflag, size = 0x4, scoped, tag = 'scoped memory for basic_mlp_forward.1']
    #allocation7 [shape = 'u8[32768]{0}', space=vmem, size = 0x8000, scoped, tag = 'input window, operand 5, single buffered']
    #allocation8 [shape = 'u8[32768]{0}', space=vmem, size = 0x8000, scoped, tag = 'input window, operand 7, single buffered']
    #allocation9 [shape = 's32[1]{0}', space=sflag, size = 0x4, scoped, tag = 'scoped memory for basic_mlp_forward.1']
    #allocation10 [shape = 'u8[32768]{0}', space=vmem, size = 0x8000, scoped, tag = 'input window, operand 9, single buffered']
    #allocation11 [shape = 'u8[4096]{0}', space=vmem, size = 0x1000, scoped, tag = 'output window, operand 0, single buffered']
    %16 = vsyncpa [#allocation3], 0
    %17 = vsyncpa [#allocation6], 0
    %18 = vsyncpa [#allocation9], 0
    %19 = vsyncpa [#allocation4], 0
    // Predicated region
    $region2: #{basic_mlp_forward.1} parent=1 // pred_check
      _
    $region3: #{basic_mlp_forward.1} parent=1 // pred_check_branch
      %21 = sbr.rel (0) target = $region5
    $region4: #{basic_mlp_forward.1} parent=1 // pred_region
      _
    $region5: #{basic_mlp_forward.1} parent=1 // pred_fallthru
      _
    // Predicated region
    $region6: #{basic_mlp_forward.1} parent=1 // pred_check
      _
    $region7: #{basic_mlp_forward.1} parent=1 // pred_check_branch
      %23 = sbr.rel (0) target = $region9
    $region8: #{basic_mlp_forward.1} parent=1 // pred_region
      %s25 = ssub.s32 1024, 1024
      %26 = vsyncadd [#allocation3], %s25
      %s27 = sshll.u32 [#allocation2], 4
      %s28 = int_to_ptr.vmem [resolvable:$true] %s27
      %33 = dma.hbm_to_vmem [thread:$0]  %s1, 1024, %s28, [#allocation3], 64, 64, 4
    $region9: #{basic_mlp_forward.1} parent=1 // pred_fallthru
      _
    // Predicated region
    $region10: #{basic_mlp_forward.1} parent=1 // pred_check
      _
    $region11: #{basic_mlp_forward.1} parent=1 // pred_check_branch
      %35 = sbr.rel (0) target = $region13
    $region12: #{basic_mlp_forward.1} parent=1 // pred_region
      _
    $region13: #{basic_mlp_forward.1} parent=1 // pred_fallthru
      _
    // Predicated region
    $region14: #{basic_mlp_forward.1} parent=1 // pred_check
      _
    $region15: #{basic_mlp_forward.1} parent=1 // pred_check_branch
      %37 = sbr.rel (0) target = $region17
    $region16: #{basic_mlp_forward.1} parent=1 // pred_region
      %s39 = ssub.s32 1024, 1024
      %40 = vsyncadd [#allocation6], %s39
      %s41 = sshll.u32 [#allocation5], 4
      %s42 = int_to_ptr.vmem [resolvable:$true] %s41
      %47 = dma.hbm_to_vmem [thread:$0]  %s3, 1024, %s42, [#allocation6], 64, 64, 4
    $region17: #{basic_mlp_forward.1} parent=1 // pred_fallthru
      _
    // Predicated region
    $region18: #{basic_mlp_forward.1} parent=1 // pred_check
      _
    $region19: #{basic_mlp_forward.1} parent=1 // pred_check_branch
      %49 = sbr.rel (0) target = $region21
    $region20: #{basic_mlp_forward.1} parent=1 // pred_region
      _
    $region21: #{basic_mlp_forward.1} parent=1 // pred_fallthru
      _
    // Predicated region
    $region22: #{basic_mlp_forward.1} parent=1 // pred_check
      _
    $region23: #{basic_mlp_forward.1} parent=1 // pred_check_branch
      %51 = sbr.rel (0) target = $region25
    $region24: #{basic_mlp_forward.1} parent=1 // pred_region
      %s53 = ssub.s32 1024, 1024
      %54 = vsyncadd [#allocation6], %s53
      %s55 = sshll.u32 [#allocation7], 4
      %s56 = int_to_ptr.vmem [resolvable:$true] %s55
      %61 = dma.hbm_to_vmem [thread:$0]  %s5, 1024, %s56, [#allocation6], 64, 64, 4
    $region25: #{basic_mlp_forward.1} parent=1 // pred_fallthru
      _
    // Predicated region
    $region26: #{basic_mlp_forward.1} parent=1 // pred_check
      _
    $region27: #{basic_mlp_forward.1} parent=1 // pred_check_branch
      %63 = sbr.rel (0) target = $region29
    $region28: #{basic_mlp_forward.1} parent=1 // pred_region
      _
    $region29: #{basic_mlp_forward.1} parent=1 // pred_fallthru
      _
    // Predicated region
    $region30: #{basic_mlp_forward.1} parent=1 // pred_check
      _
    $region31: #{basic_mlp_forward.1} parent=1 // pred_check_branch
      %65 = sbr.rel (0) target = $region33
    $region32: #{basic_mlp_forward.1} parent=1 // pred_region
      %s67 = ssub.s32 1024, 1024
      %68 = vsyncadd [#allocation9], %s67
      %s69 = sshll.u32 [#allocation8], 4
      %s70 = int_to_ptr.vmem [resolvable:$true] %s69
      %75 = dma.hbm_to_vmem [thread:$0]  %s7, 1024, %s70, [#allocation9], 64, 64, 4
    $region33: #{basic_mlp_forward.1} parent=1 // pred_fallthru
      _
    // Predicated region
    $region34: #{basic_mlp_forward.1} parent=1 // pred_check
      _
    $region35: #{basic_mlp_forward.1} parent=1 // pred_check_branch
      %77 = sbr.rel (0) target = $region37
    $region36: #{basic_mlp_forward.1} parent=1 // pred_region
      _
    $region37: #{basic_mlp_forward.1} parent=1 // pred_fallthru
      _
    // Predicated region
    $region38: #{basic_mlp_forward.1} parent=1 // pred_check
      _
    $region39: #{basic_mlp_forward.1} parent=1 // pred_check_branch
      %79 = sbr.rel (0) target = $region41
    $region40: #{basic_mlp_forward.1} parent=1 // pred_region
      %s81 = ssub.s32 1024, 1024
      %82 = vsyncadd [#allocation9], %s81
      %s83 = sshll.u32 [#allocation10], 4
      %s84 = int_to_ptr.vmem [resolvable:$true] %s83
      %89 = dma.hbm_to_vmem [thread:$0]  %s9, 1024, %s84, [#allocation9], 64, 64, 4
    $region41: #{basic_mlp_forward.1} parent=1 // pred_fallthru
      _
    // Predicated region
    $region42: #{basic_mlp_forward.1} parent=1 // pred_check
      _
    $region43: #{basic_mlp_forward.1} parent=1 // pred_check_branch
      %91 = sbr.rel (0) target = $region45
    $region44: #{basic_mlp_forward.1} parent=1 // pred_region
      _
    $region45: #{basic_mlp_forward.1} parent=1 // pred_fallthru
      _
    // Predicated region
    $region46: #{basic_mlp_forward.1} parent=1 // pred_check
      _
    $region47: #{basic_mlp_forward.1} parent=1 // pred_check_branch
      %93 = sbr.rel (0) target = $region49
    $region48: #{basic_mlp_forward.1} parent=1 // pred_region
      %94 = dma.done [#allocation3], 1024
    $region49: #{basic_mlp_forward.1} parent=1 // pred_fallthru
      _
    // Predicated region
    $region50: #{basic_mlp_forward.1} parent=1 // pred_check
      _
    $region51: #{basic_mlp_forward.1} parent=1 // pred_check_branch
      %96 = sbr.rel (0) target = $region53
    $region52: #{basic_mlp_forward.1} parent=1 // pred_region
      %97 = dma.done [#allocation6], 1024
    $region53: #{basic_mlp_forward.1} parent=1 // pred_fallthru
      _
    // Predicated region
    $region54: #{basic_mlp_forward.1} parent=1 // pred_check
      _
    $region55: #{basic_mlp_forward.1} parent=1 // pred_check_branch
      %99 = sbr.rel (0) target = $region57
    $region56: #{basic_mlp_forward.1} parent=1 // pred_region
      %100 = dma.done [#allocation6], 1024
    $region57: #{basic_mlp_forward.1} parent=1 // pred_fallthru
      _
    // Predicated region
    $region58: #{basic_mlp_forward.1} parent=1 // pred_check
      _
    $region59: #{basic_mlp_forward.1} parent=1 // pred_check_branch
      %102 = sbr.rel (0) target = $region61
    $region60: #{basic_mlp_forward.1} parent=1 // pred_region
      %103 = dma.done [#allocation9], 1024
    $region61: #{basic_mlp_forward.1} parent=1 // pred_fallthru
      _
    // Predicated region
    $region62: #{basic_mlp_forward.1} parent=1 // pred_check
      _
    $region63: #{basic_mlp_forward.1} parent=1 // pred_check_branch
      %105 = sbr.rel (0) target = $region65
    $region64: #{basic_mlp_forward.1} parent=1 // pred_region
      %106 = dma.done [#allocation9], 1024
    $region65: #{basic_mlp_forward.1} parent=1 // pred_fallthru
      _
    %v108 = vld [vmem:[%s0] sm:$0xf]
    %v109 = vld [vmem:[#allocation2] sm:$0xf]
    %v110 = vld [vmem:[#allocation2 + $0x4] sm:$0xf]
    %v111 = vld [vmem:[#allocation2 + $0x8] sm:$0xf]
    %v112 = vld [vmem:[#allocation2 + $0xc] sm:$0xf]
    %v113 = vld [vmem:[#allocation2 + $0x10] sm:$0xf]
    %v114 = vld [vmem:[#allocation2 + $0x14] sm:$0xf]
    %v115 = vld [vmem:[#allocation2 + $0x18] sm:$0xf]
    %v116 = vld [vmem:[#allocation2 + $0x1c] sm:$0xf]
    %v117 = vld [vmem:[#allocation2 + $0x20] sm:$0xf]
    %v118 = vld [vmem:[#allocation2 + $0x24] sm:$0xf]
    %v119 = vld [vmem:[#allocation2 + $0x28] sm:$0xf]
    %v120 = vld [vmem:[#allocation2 + $0x2c] sm:$0xf]
    %v121 = vld [vmem:[#allocation2 + $0x30] sm:$0xf]
    %v122 = vld [vmem:[#allocation2 + $0x34] sm:$0xf]
    %v123 = vld [vmem:[#allocation2 + $0x38] sm:$0xf]
    %v124 = vld [vmem:[#allocation2 + $0x3c] sm:$0xf]
    %v125 = vld [vmem:[%s2] sm:$0x1]
    %v127 = vlaneseq
    %v128 = vshrl.u32 %v127, 7
    %v129 = vsub.s32 0, %v128
    %v130 = vrot.slane %v125, %v129
    %v148 = vunpack.c.l.b16 %v109
    %v149 = vunpack.c.l.b16 %v110
    %v150 = vunpack.c.l.b16 %v111
    %v151 = vunpack.c.l.b16 %v112
    %v152 = vunpack.c.l.b16 %v113
    %v153 = vunpack.c.l.b16 %v114
    %v154 = vunpack.c.l.b16 %v115
    %v155 = vunpack.c.l.b16 %v116
    %v156 = vunpack.c.l.b16 %v117
    %v157 = vunpack.c.l.b16 %v118
    %v158 = vunpack.c.l.b16 %v119
    %v159 = vunpack.c.l.b16 %v120
    %v160 = vunpack.c.l.b16 %v121
    %v161 = vunpack.c.l.b16 %v122
    %v162 = vunpack.c.l.b16 %v123
    %v163 = vunpack.c.l.b16 %v124
    %v164 = vpack.c.b16 %v149, %v148
    %v165 = vpack.c.b16 %v151, %v150
    %v166 = vpack.c.b16 %v153, %v152
    %v167 = vpack.c.b16 %v155, %v154
    %v168 = vpack.c.b16 %v157, %v156
    %v169 = vpack.c.b16 %v159, %v158
    %v170 = vpack.c.b16 %v161, %v160
    %v171 = vpack.c.b16 %v163, %v162
    %180 = vmatprep.subr.bf16.mxu0 0
    %181 = vmatpush1.bf16.msra.mxu0 %v171
    %182 = vmatprep.subr.bf16.mxu0 0
    %183 = vmatpush1.bf16.msra.mxu0 %v170
    %184 = vmatprep.subr.bf16.mxu0 0
    %185 = vmatpush1.bf16.msra.mxu0 %v169
    %186 = vmatprep.subr.bf16.mxu0 0
    %187 = vmatpush1.bf16.msra.mxu0 %v168
    %188 = vmatprep.subr.bf16.mxu0 0
    %189 = vmatpush1.bf16.msra.mxu0 %v167
    %190 = vmatprep.subr.bf16.mxu0 0
    %191 = vmatpush1.bf16.msra.mxu0 %v166
    %192 = vmatprep.subr.bf16.mxu0 0
    %193 = vmatpush1.bf16.msra.mxu0 %v165
    %194 = vmatprep.subr.bf16.mxu0 0
    %195 = vmatpush1.bf16.msra.mxu0 %v164
    %196 = vmatprep.subr.bf16.mxu0 0
    %197 = vmatpush2.bf16.msra.mxu0 0
    %198 = vmatprep.subr.bf16.mxu0 0
    %199 = vmatpush2.bf16.msra.mxu0 0
    %200 = vmatprep.subr.bf16.mxu0 0
    %201 = vmatpush2.bf16.msra.mxu0 0
    %202 = vmatprep.subr.bf16.mxu0 0
    %203 = vmatpush2.bf16.msra.mxu0 0
    %204 = vmatprep.subr.bf16.mxu0 0
    %205 = vmatpush2.bf16.msra.mxu0 0
    %206 = vmatprep.subr.bf16.mxu0 0
    %207 = vmatpush2.bf16.msra.mxu0 0
    %208 = vmatprep.subr.bf16.mxu0 0
    %209 = vmatpush2.bf16.msra.mxu0 0
    %210 = vmatprep.subr.bf16.mxu0 0
    %211 = vmatpush2.bf16.msra.mxu0 0
    %212 = vmatprep.mubr.bf16.mxu0 0
    %213 = vmatmul.mubr.bf16.gmra.mxu0 %v108
    %v214 = vpop.f32.mrf.mxu0
    %v215 = vadd.f32 %v130, %v214
    %v216 = vpop.f32.mrf.mxu0
    %v217 = vpop.f32.mrf.mxu0
    %v218 = vpop.f32.mrf.mxu0
    %219 = vdwg.mxu0
    %v220 = vmul.f32 %v215, 0.01
    %v221 = vmax.f32 %v215, %v220
    %v222 = vpack.c.bf16 %v221, %v221
    %v223 = vld [vmem:[#allocation5] sm:$0xf]
    %v224 = vld [vmem:[#allocation5 + $0x4] sm:$0xf]
    %v225 = vld [vmem:[#allocation5 + $0x8] sm:$0xf]
    %v226 = vld [vmem:[#allocation5 + $0xc] sm:$0xf]
    %v227 = vld [vmem:[#allocation5 + $0x10] sm:$0xf]
    %v228 = vld [vmem:[#allocation5 + $0x14] sm:$0xf]
    %v229 = vld [vmem:[#allocation5 + $0x18] sm:$0xf]
    %v230 = vld [vmem:[#allocation5 + $0x1c] sm:$0xf]
    %v231 = vld [vmem:[#allocation5 + $0x20] sm:$0xf]
    %v232 = vld [vmem:[#allocation5 + $0x24] sm:$0xf]
    %v233 = vld [vmem:[#allocation5 + $0x28] sm:$0xf]
    %v234 = vld [vmem:[#allocation5 + $0x2c] sm:$0xf]
    %v235 = vld [vmem:[#allocation5 + $0x30] sm:$0xf]
    %v236 = vld [vmem:[#allocation5 + $0x34] sm:$0xf]
    %v237 = vld [vmem:[#allocation5 + $0x38] sm:$0xf]
    %v238 = vld [vmem:[#allocation5 + $0x3c] sm:$0xf]
    %v239 = vld [vmem:[%s4] sm:$0x1]
    %v241 = vlaneseq
    %v242 = vshrl.u32 %v241, 7
    %v243 = vsub.s32 0, %v242
    %v244 = vrot.slane %v239, %v243
    %v262 = vunpack.c.l.b16 %v223
    %v263 = vunpack.c.l.b16 %v224
    %v264 = vunpack.c.l.b16 %v225
    %v265 = vunpack.c.l.b16 %v226
    %v266 = vunpack.c.l.b16 %v227
    %v267 = vunpack.c.l.b16 %v228
    %v268 = vunpack.c.l.b16 %v229
    %v269 = vunpack.c.l.b16 %v230
    %v270 = vunpack.c.l.b16 %v231
    %v271 = vunpack.c.l.b16 %v232
    %v272 = vunpack.c.l.b16 %v233
    %v273 = vunpack.c.l.b16 %v234
    %v274 = vunpack.c.l.b16 %v235
    %v275 = vunpack.c.l.b16 %v236
    %v276 = vunpack.c.l.b16 %v237
    %v277 = vunpack.c.l.b16 %v238
    %v278 = vpack.c.b16 %v263, %v262
    %v279 = vpack.c.b16 %v265, %v264
    %v280 = vpack.c.b16 %v267, %v266
    %v281 = vpack.c.b16 %v269, %v268
    %v282 = vpack.c.b16 %v271, %v270
    %v283 = vpack.c.b16 %v273, %v272
    %v284 = vpack.c.b16 %v275, %v274
    %v285 = vpack.c.b16 %v277, %v276
    %294 = vmatprep.subr.bf16.mxu0 0
    %295 = vmatpush1.bf16.msra.mxu0 %v285
    %296 = vmatprep.subr.bf16.mxu0 0
    %297 = vmatpush1.bf16.msra.mxu0 %v284
    %298 = vmatprep.subr.bf16.mxu0 0
    %299 = vmatpush1.bf16.msra.mxu0 %v283
    %300 = vmatprep.subr.bf16.mxu0 0
    %301 = vmatpush1.bf16.msra.mxu0 %v282
    %302 = vmatprep.subr.bf16.mxu0 0
    %303 = vmatpush1.bf16.msra.mxu0 %v281
    %304 = vmatprep.subr.bf16.mxu0 0
    %305 = vmatpush1.bf16.msra.mxu0 %v280
    %306 = vmatprep.subr.bf16.mxu0 0
    %307 = vmatpush1.bf16.msra.mxu0 %v279
    %308 = vmatprep.subr.bf16.mxu0 0
    %309 = vmatpush1.bf16.msra.mxu0 %v278
    %310 = vmatprep.subr.bf16.mxu0 0
    %311 = vmatpush2.bf16.msra.mxu0 0
    %312 = vmatprep.subr.bf16.mxu0 0
    %313 = vmatpush2.bf16.msra.mxu0 0
    %314 = vmatprep.subr.bf16.mxu0 0
    %315 = vmatpush2.bf16.msra.mxu0 0
    %316 = vmatprep.subr.bf16.mxu0 0
    %317 = vmatpush2.bf16.msra.mxu0 0
    %318 = vmatprep.subr.bf16.mxu0 0
    %319 = vmatpush2.bf16.msra.mxu0 0
    %320 = vmatprep.subr.bf16.mxu0 0
    %321 = vmatpush2.bf16.msra.mxu0 0
    %322 = vmatprep.subr.bf16.mxu0 0
    %323 = vmatpush2.bf16.msra.mxu0 0
    %324 = vmatprep.subr.bf16.mxu0 0
    %325 = vmatpush2.bf16.msra.mxu0 0
    %326 = vmatprep.mubr.bf16.mxu0 0
    %327 = vmatmul.mubr.bf16.gmra.mxu0 %v222
    %v328 = vpop.f32.mrf.mxu0
    %v329 = vadd.f32 %v244, %v328
    %v330 = vpop.f32.mrf.mxu0
    %v331 = vpop.f32.mrf.mxu0
    %v332 = vpop.f32.mrf.mxu0
    %333 = vdwg.mxu0
    %v334 = vmul.f32 %v329, 0.01
    %v335 = vmax.f32 %v329, %v334
    %v336 = vpack.c.bf16 %v335, %v335
    %v337 = vld [vmem:[#allocation7] sm:$0xf]
    %v338 = vld [vmem:[#allocation7 + $0x4] sm:$0xf]
    %v339 = vld [vmem:[#allocation7 + $0x8] sm:$0xf]
    %v340 = vld [vmem:[#allocation7 + $0xc] sm:$0xf]
    %v341 = vld [vmem:[#allocation7 + $0x10] sm:$0xf]
    %v342 = vld [vmem:[#allocation7 + $0x14] sm:$0xf]
    %v343 = vld [vmem:[#allocation7 + $0x18] sm:$0xf]
    %v344 = vld [vmem:[#allocation7 + $0x1c] sm:$0xf]
    %v345 = vld [vmem:[#allocation7 + $0x20] sm:$0xf]
    %v346 = vld [vmem:[#allocation7 + $0x24] sm:$0xf]
    %v347 = vld [vmem:[#allocation7 + $0x28] sm:$0xf]
    %v348 = vld [vmem:[#allocation7 + $0x2c] sm:$0xf]
    %v349 = vld [vmem:[#allocation7 + $0x30] sm:$0xf]
    %v350 = vld [vmem:[#allocation7 + $0x34] sm:$0xf]
    %v351 = vld [vmem:[#allocation7 + $0x38] sm:$0xf]
    %v352 = vld [vmem:[#allocation7 + $0x3c] sm:$0xf]
    %v353 = vld [vmem:[%s6] sm:$0x1]
    %v355 = vlaneseq
    %v356 = vshrl.u32 %v355, 7
    %v357 = vsub.s32 0, %v356
    %v358 = vrot.slane %v353, %v357
    %v376 = vunpack.c.l.b16 %v337
    %v377 = vunpack.c.l.b16 %v338
    %v378 = vunpack.c.l.b16 %v339
    %v379 = vunpack.c.l.b16 %v340
    %v380 = vunpack.c.l.b16 %v341
    %v381 = vunpack.c.l.b16 %v342
    %v382 = vunpack.c.l.b16 %v343
    %v383 = vunpack.c.l.b16 %v344
    %v384 = vunpack.c.l.b16 %v345
    %v385 = vunpack.c.l.b16 %v346
    %v386 = vunpack.c.l.b16 %v347
    %v387 = vunpack.c.l.b16 %v348
    %v388 = vunpack.c.l.b16 %v349
    %v389 = vunpack.c.l.b16 %v350
    %v390 = vunpack.c.l.b16 %v351
    %v391 = vunpack.c.l.b16 %v352
    %v392 = vpack.c.b16 %v377, %v376
    %v393 = vpack.c.b16 %v379, %v378
    %v394 = vpack.c.b16 %v381, %v380
    %v395 = vpack.c.b16 %v383, %v382
    %v396 = vpack.c.b16 %v385, %v384
    %v397 = vpack.c.b16 %v387, %v386
    %v398 = vpack.c.b16 %v389, %v388
    %v399 = vpack.c.b16 %v391, %v390
    %408 = vmatprep.subr.bf16.mxu0 0
    %409 = vmatpush1.bf16.msra.mxu0 %v399
    %410 = vmatprep.subr.bf16.mxu0 0
    %411 = vmatpush1.bf16.msra.mxu0 %v398
    %412 = vmatprep.subr.bf16.mxu0 0
    %413 = vmatpush1.bf16.msra.mxu0 %v397
    %414 = vmatprep.subr.bf16.mxu0 0
    %415 = vmatpush1.bf16.msra.mxu0 %v396
    %416 = vmatprep.subr.bf16.mxu0 0
    %417 = vmatpush1.bf16.msra.mxu0 %v395
    %418 = vmatprep.subr.bf16.mxu0 0
    %419 = vmatpush1.bf16.msra.mxu0 %v394
    %420 = vmatprep.subr.bf16.mxu0 0
    %421 = vmatpush1.bf16.msra.mxu0 %v393
    %422 = vmatprep.subr.bf16.mxu0 0
    %423 = vmatpush1.bf16.msra.mxu0 %v392
    %424 = vmatprep.subr.bf16.mxu0 0
    %425 = vmatpush2.bf16.msra.mxu0 0
    %426 = vmatprep.subr.bf16.mxu0 0
    %427 = vmatpush2.bf16.msra.mxu0 0
    %428 = vmatprep.subr.bf16.mxu0 0
    %429 = vmatpush2.bf16.msra.mxu0 0
    %430 = vmatprep.subr.bf16.mxu0 0
    %431 = vmatpush2.bf16.msra.mxu0 0
    %432 = vmatprep.subr.bf16.mxu0 0
    %433 = vmatpush2.bf16.msra.mxu0 0
    %434 = vmatprep.subr.bf16.mxu0 0
    %435 = vmatpush2.bf16.msra.mxu0 0
    %436 = vmatprep.subr.bf16.mxu0 0
    %437 = vmatpush2.bf16.msra.mxu0 0
    %438 = vmatprep.subr.bf16.mxu0 0
    %439 = vmatpush2.bf16.msra.mxu0 0
    %440 = vmatprep.mubr.bf16.mxu0 0
    %441 = vmatmul.mubr.bf16.gmra.mxu0 %v336
    %v442 = vpop.f32.mrf.mxu0
    %v443 = vadd.f32 %v358, %v442
    %v444 = vpop.f32.mrf.mxu0
    %v445 = vpop.f32.mrf.mxu0
    %v446 = vpop.f32.mrf.mxu0
    %447 = vdwg.mxu0
    %v448 = vmul.f32 %v443, 0.01
    %v449 = vmax.f32 %v443, %v448
    %v450 = vpack.c.bf16 %v449, %v449
    %v451 = vld [vmem:[#allocation8] sm:$0xf]
    %v452 = vld [vmem:[#allocation8 + $0x4] sm:$0xf]
    %v453 = vld [vmem:[#allocation8 + $0x8] sm:$0xf]
    %v454 = vld [vmem:[#allocation8 + $0xc] sm:$0xf]
    %v455 = vld [vmem:[#allocation8 + $0x10] sm:$0xf]
    %v456 = vld [vmem:[#allocation8 + $0x14] sm:$0xf]
    %v457 = vld [vmem:[#allocation8 + $0x18] sm:$0xf]
    %v458 = vld [vmem:[#allocation8 + $0x1c] sm:$0xf]
    %v459 = vld [vmem:[#allocation8 + $0x20] sm:$0xf]
    %v460 = vld [vmem:[#allocation8 + $0x24] sm:$0xf]
    %v461 = vld [vmem:[#allocation8 + $0x28] sm:$0xf]
    %v462 = vld [vmem:[#allocation8 + $0x2c] sm:$0xf]
    %v463 = vld [vmem:[#allocation8 + $0x30] sm:$0xf]
    %v464 = vld [vmem:[#allocation8 + $0x34] sm:$0xf]
    %v465 = vld [vmem:[#allocation8 + $0x38] sm:$0xf]
    %v466 = vld [vmem:[#allocation8 + $0x3c] sm:$0xf]
    %v467 = vld [vmem:[%s8] sm:$0x1]
    %v469 = vlaneseq
    %v470 = vshrl.u32 %v469, 7
    %v471 = vsub.s32 0, %v470
    %v472 = vrot.slane %v467, %v471
    %v490 = vunpack.c.l.b16 %v451
    %v491 = vunpack.c.l.b16 %v452
    %v492 = vunpack.c.l.b16 %v453
    %v493 = vunpack.c.l.b16 %v454
    %v494 = vunpack.c.l.b16 %v455
    %v495 = vunpack.c.l.b16 %v456
    %v496 = vunpack.c.l.b16 %v457
    %v497 = vunpack.c.l.b16 %v458
    %v498 = vunpack.c.l.b16 %v459
    %v499 = vunpack.c.l.b16 %v460
    %v500 = vunpack.c.l.b16 %v461
    %v501 = vunpack.c.l.b16 %v462
    %v502 = vunpack.c.l.b16 %v463
    %v503 = vunpack.c.l.b16 %v464
    %v504 = vunpack.c.l.b16 %v465
    %v505 = vunpack.c.l.b16 %v466
    %v506 = vpack.c.b16 %v491, %v490
    %v507 = vpack.c.b16 %v493, %v492
    %v508 = vpack.c.b16 %v495, %v494
    %v509 = vpack.c.b16 %v497, %v496
    %v510 = vpack.c.b16 %v499, %v498
    %v511 = vpack.c.b16 %v501, %v500
    %v512 = vpack.c.b16 %v503, %v502
    %v513 = vpack.c.b16 %v505, %v504
    %522 = vmatprep.subr.bf16.mxu0 0
    %523 = vmatpush1.bf16.msra.mxu0 %v513
    %524 = vmatprep.subr.bf16.mxu0 0
    %525 = vmatpush1.bf16.msra.mxu0 %v512
    %526 = vmatprep.subr.bf16.mxu0 0
    %527 = vmatpush1.bf16.msra.mxu0 %v511
    %528 = vmatprep.subr.bf16.mxu0 0
    %529 = vmatpush1.bf16.msra.mxu0 %v510
    %530 = vmatprep.subr.bf16.mxu0 0
    %531 = vmatpush1.bf16.msra.mxu0 %v509
    %532 = vmatprep.subr.bf16.mxu0 0
    %533 = vmatpush1.bf16.msra.mxu0 %v508
    %534 = vmatprep.subr.bf16.mxu0 0
    %535 = vmatpush1.bf16.msra.mxu0 %v507
    %536 = vmatprep.subr.bf16.mxu0 0
    %537 = vmatpush1.bf16.msra.mxu0 %v506
    %538 = vmatprep.subr.bf16.mxu0 0
    %539 = vmatpush2.bf16.msra.mxu0 0
    %540 = vmatprep.subr.bf16.mxu0 0
    %541 = vmatpush2.bf16.msra.mxu0 0
    %542 = vmatprep.subr.bf16.mxu0 0
    %543 = vmatpush2.bf16.msra.mxu0 0
    %544 = vmatprep.subr.bf16.mxu0 0
    %545 = vmatpush2.bf16.msra.mxu0 0
    %546 = vmatprep.subr.bf16.mxu0 0
    %547 = vmatpush2.bf16.msra.mxu0 0
    %548 = vmatprep.subr.bf16.mxu0 0
    %549 = vmatpush2.bf16.msra.mxu0 0
    %550 = vmatprep.subr.bf16.mxu0 0
    %551 = vmatpush2.bf16.msra.mxu0 0
    %552 = vmatprep.subr.bf16.mxu0 0
    %553 = vmatpush2.bf16.msra.mxu0 0
    %554 = vmatprep.mubr.bf16.mxu0 0
    %555 = vmatmul.mubr.bf16.gmra.mxu0 %v450
    %v556 = vpop.f32.mrf.mxu0
    %v557 = vadd.f32 %v472, %v556
    %v558 = vpop.f32.mrf.mxu0
    %v559 = vpop.f32.mrf.mxu0
    %v560 = vpop.f32.mrf.mxu0
    %561 = vdwg.mxu0
    %v562 = vmul.f32 %v557, 0.01
    %v563 = vmax.f32 %v557, %v562
    %v564 = vpack.c.bf16 %v563, %v563
    %v565 = vld [vmem:[#allocation10] sm:$0xf]
    %v566 = vld [vmem:[#allocation10 + $0x4] sm:$0xf]
    %v567 = vld [vmem:[#allocation10 + $0x8] sm:$0xf]
    %v568 = vld [vmem:[#allocation10 + $0xc] sm:$0xf]
    %v569 = vld [vmem:[#allocation10 + $0x10] sm:$0xf]
    %v570 = vld [vmem:[#allocation10 + $0x14] sm:$0xf]
    %v571 = vld [vmem:[#allocation10 + $0x18] sm:$0xf]
    %v572 = vld [vmem:[#allocation10 + $0x1c] sm:$0xf]
    %v573 = vld [vmem:[#allocation10 + $0x20] sm:$0xf]
    %v574 = vld [vmem:[#allocation10 + $0x24] sm:$0xf]
    %v575 = vld [vmem:[#allocation10 + $0x28] sm:$0xf]
    %v576 = vld [vmem:[#allocation10 + $0x2c] sm:$0xf]
    %v577 = vld [vmem:[#allocation10 + $0x30] sm:$0xf]
    %v578 = vld [vmem:[#allocation10 + $0x34] sm:$0xf]
    %v579 = vld [vmem:[#allocation10 + $0x38] sm:$0xf]
    %v580 = vld [vmem:[#allocation10 + $0x3c] sm:$0xf]
    %v581 = vld [vmem:[%s10] sm:$0x1]
    %v583 = vlaneseq
    %v584 = vshrl.u32 %v583, 7
    %v585 = vsub.s32 0, %v584
    %v586 = vrot.slane %v581, %v585
    %v604 = vunpack.c.l.b16 %v565
    %v605 = vunpack.c.l.b16 %v566
    %v606 = vunpack.c.l.b16 %v567
    %v607 = vunpack.c.l.b16 %v568
    %v608 = vunpack.c.l.b16 %v569
    %v609 = vunpack.c.l.b16 %v570
    %v610 = vunpack.c.l.b16 %v571
    %v611 = vunpack.c.l.b16 %v572
    %v612 = vunpack.c.l.b16 %v573
    %v613 = vunpack.c.l.b16 %v574
    %v614 = vunpack.c.l.b16 %v575
    %v615 = vunpack.c.l.b16 %v576
    %v616 = vunpack.c.l.b16 %v577
    %v617 = vunpack.c.l.b16 %v578
    %v618 = vunpack.c.l.b16 %v579
    %v619 = vunpack.c.l.b16 %v580
    %v620 = vpack.c.b16 %v605, %v604
    %v621 = vpack.c.b16 %v607, %v606
    %v622 = vpack.c.b16 %v609, %v608
    %v623 = vpack.c.b16 %v611, %v610
    %v624 = vpack.c.b16 %v613, %v612
    %v625 = vpack.c.b16 %v615, %v614
    %v626 = vpack.c.b16 %v617, %v616
    %v627 = vpack.c.b16 %v619, %v618
    %636 = vmatprep.subr.bf16.mxu0 0
    %637 = vmatpush1.bf16.msra.mxu0 %v627
    %638 = vmatprep.subr.bf16.mxu0 0
    %639 = vmatpush1.bf16.msra.mxu0 %v626
    %640 = vmatprep.subr.bf16.mxu0 0
    %641 = vmatpush1.bf16.msra.mxu0 %v625
    %642 = vmatprep.subr.bf16.mxu0 0
    %643 = vmatpush1.bf16.msra.mxu0 %v624
    %644 = vmatprep.subr.bf16.mxu0 0
    %645 = vmatpush1.bf16.msra.mxu0 %v623
    %646 = vmatprep.subr.bf16.mxu0 0
    %647 = vmatpush1.bf16.msra.mxu0 %v622
    %648 = vmatprep.subr.bf16.mxu0 0
    %649 = vmatpush1.bf16.msra.mxu0 %v621
    %650 = vmatprep.subr.bf16.mxu0 0
    %651 = vmatpush1.bf16.msra.mxu0 %v620
    %652 = vmatprep.subr.bf16.mxu0 0
    %653 = vmatpush2.bf16.msra.mxu0 0
    %654 = vmatprep.subr.bf16.mxu0 0
    %655 = vmatpush2.bf16.msra.mxu0 0
    %656 = vmatprep.subr.bf16.mxu0 0
    %657 = vmatpush2.bf16.msra.mxu0 0
    %658 = vmatprep.subr.bf16.mxu0 0
    %659 = vmatpush2.bf16.msra.mxu0 0
    %660 = vmatprep.subr.bf16.mxu0 0
    %661 = vmatpush2.bf16.msra.mxu0 0
    %662 = vmatprep.subr.bf16.mxu0 0
    %663 = vmatpush2.bf16.msra.mxu0 0
    %664 = vmatprep.subr.bf16.mxu0 0
    %665 = vmatpush2.bf16.msra.mxu0 0
    %666 = vmatprep.subr.bf16.mxu0 0
    %667 = vmatpush2.bf16.msra.mxu0 0
    %668 = vmatprep.mubr.bf16.mxu0 0
    %669 = vmatmul.mubr.bf16.gmra.mxu0 %v564
    %v670 = vpop.f32.mrf.mxu0
    %v671 = vadd.f32 %v586, %v670
    %v672 = vpop.f32.mrf.mxu0
    %v673 = vpop.f32.mrf.mxu0
    %v674 = vpop.f32.mrf.mxu0
    %675 = vdwg.mxu0
    %676 = vst [vmem:[#allocation11] sm:$0xff] %v671
    // Predicated region
    $region66: #{basic_mlp_forward.1} parent=1 // pred_check
      _
    $region67: #{basic_mlp_forward.1} parent=1 // pred_check_branch
      %678 = sbr.rel (0) target = $region69
    $region68: #{basic_mlp_forward.1} parent=1 // pred_region
      %s680 = ssub.s32 128, 128
      %681 = vsyncadd [#allocation4], %s680
      %s683 = sshll.u32 [#allocation11], 4
      %s684 = int_to_ptr.vmem [resolvable:$true] %s683
      %686 = dma.vmem_to_hbm [thread:$0]  %s684, 128, %s11, [#allocation4]
    $region69: #{basic_mlp_forward.1} parent=1 // pred_fallthru
      _
    // Predicated region
    $region70: #{basic_mlp_forward.1} parent=1 // pred_check
      _
    $region71: #{basic_mlp_forward.1} parent=1 // pred_check_branch
      %688 = sbr.rel (0) target = $region73
    $region72: #{basic_mlp_forward.1} parent=1 // pred_region
      %689 = dma.done [#allocation4], 128
    $region73: #{basic_mlp_forward.1} parent=1 // pred_fallthru
      _
    %690 = vsyncpa [#allocation3], 1
    %691 = vsyncpa [#allocation6], 1
    %692 = vsyncpa [#allocation9], 1
    %693 = vsyncpa [#allocation4], 1

</llo_original>
